<compile_context>
chip_gen: v7x
topology: tpu7x:2x2x1
jax: 0.10.0
libtpu: 0.0.40
codegen_flags: <defaults>
</compile_context>

<pallas_src>
import functools
import math

import jax
import jax.numpy as jnp
from jax import lax
from jax.experimental import pallas as pl
from jax.experimental.pallas import tpu as pltpu


# ------------------------------ RoPE cache (glue) --------------------------------

def rope_cos_sin(seq_len, dim, base=10000.0):
    """cos/sin tables, shape (seq_len, dim) — matches RotaryEmbedding's cache."""
    inv_freq = 1.0 / (base ** (jnp.arange(0, dim, 2, dtype=jnp.float32) / dim))
    t = jnp.arange(seq_len, dtype=jnp.float32)
    freqs = jnp.einsum("i,j->ij", t, inv_freq)
    emb = jnp.concatenate([freqs, freqs], axis=-1)
    return jnp.cos(emb), jnp.sin(emb)


def _rotate_half(x):
    h = x.shape[-1] // 2
    return jnp.concatenate([-x[..., h:], x[..., :h]], axis=-1)


def _rope(x, c, s):
    return x * c + _rotate_half(x) * s


def _lane_roll(x, shift):
    """Static circular shift along the last (lane) axis (jnp.roll semantics).

    TODO(synk): switch to pltpu.roll (single XLU vrot) once narrow (<128 lane)
    extents are confirmed supported by the Mosaic rotate lowering.
    """
    n = x.shape[-1]
    shift = shift % n
    if shift == 0:
        return x
    return jnp.concatenate([x[:, n - shift:], x[:, :n - shift]], axis=-1)


# ------------------------------ Fused MHA kernel ----------------------------------

def _mha_kernel(num_heads, approx_recip,
                xq_ref, xk_ref, xv_ref,
                wq_ref, wk_ref, wv_ref, wo_ref,
                bq_ref, bk_ref, bv_ref, bo_ref,
                cq_ref, sqh_ref, sql_ref, ck_ref, skh_ref, skl_ref,
                o_ref):
    f32 = jnp.float32
    mxu = wq_ref.dtype          # MXU operand dtype (bf16 fast path, f32 precise path)

    # ---- Q/K/V projections on whole (S, E) per-batch slabs (MXU, f32 accumulate) ----
    q = jnp.dot(xq_ref[...].astype(mxu), wq_ref[...], preferred_element_type=f32) + bq_ref[...]
    k = jnp.dot(xk_ref[...].astype(mxu), wk_ref[...], preferred_element_type=f32) + bk_ref[...]
    v = jnp.dot(xv_ref[...].astype(mxu), wv_ref[...], preferred_element_type=f32) + bv_ref[...]

    E = q.shape[-1]
    H = E // num_heads
    h = H // 2

    # ---- composed double-RoPE on the flat (S, E) layout, f32 elementwise ----
    # rotate_half per head is expressed as two lane rotations of the whole slab
    # with per-head half masks / signs folded into the sin tables, so no (E,E)
    # permutation matmul is needed.  The 1/sqrt(head_dim) score scale is
    # pre-folded into the Q tables (zero in-kernel scaling work).
    q = q * cq_ref[...] + _lane_roll(q, h) * sqh_ref[...] + _lane_roll(q, E - h) * sql_ref[...]
    k = k * ck_ref[...] + _lane_roll(k, h) * skh_ref[...] + _lane_roll(k, E - h) * skl_ref[...]

    qm = q.astype(mxu)
    km = k.astype(mxu)
    vm = v.astype(mxu)
    wo = wo_ref[...]

    # ---- per-head attention, accumulated straight into the output projection ----
    Sq = q.shape[0]
    acc = jnp.zeros((Sq, E), f32)
    dims = (((1,), (1,)), ((), ()))            # qh @ kh^T (contract last dims)
    for n in range(num_heads):                 # static unroll; only `acc` carried
        sl = slice(n * H, (n + 1) * H)
        s = lax.dot_general(qm[:, sl], km[:, sl], dims, preferred_element_type=f32)
        m = jnp.max(s, axis=-1, keepdims=True)
        e = jnp.exp(s - m)
        p = e * pl.reciprocal(jnp.sum(e, axis=-1, keepdims=True), approx=approx_recip)
        oh = jnp.dot(p.astype(mxu), vm[:, sl], preferred_element_type=f32)        # (Sq, H)
        acc = acc + jnp.dot(oh.astype(mxu), wo[sl, :], preferred_element_type=f32)  # += oh @ Wo_n

    # ---- lane-dense (Sq, E) store ----
    o_ref[...] = (acc + bo_ref[...]).astype(o_ref.dtype)


# --------------------------- MultiHeadAttention forward --------------------------

def _vmem_limit_bytes():
    try:
        kind = jax.devices()[0].device_kind.lower()
    except Exception:
        kind = ""
    # v4/v5/v6 TensorCores have 128 MiB physical VMEM -> raise the scoped limit;
    # anything else (e.g. v7x with 64 MiB/TC, or unknown) stays conservative.
    if any(tag in kind for tag in ("v4", "v5", "v6")):
        return 96 * 1024 * 1024
    return 48 * 1024 * 1024


def mha_forward(params, query, key, value, num_heads, mxu_dtype=jnp.bfloat16):
    B, Sq, E = query.shape
    Bk, Sk, Ek = key.shape
    Bv, Sv, Ev = value.shape
    assert B == Bk == Bv and E == Ek == Ev
    assert Sk == Sv, "keys and values must share a sequence length"
    # The reference's apply_rotary_emb(Q, K, cos_q, sin_q) broadcasts cos_q over
    # K and therefore implicitly requires S_q == S_k; keep that explicit.
    assert Sq == Sk
    assert E % num_heads == 0
    H = E // num_heads
    assert H % 2 == 0
    h = H // 2
    scale = 1.0 / math.sqrt(float(H))

    cos_q, sin_q = rope_cos_sin(Sq, H)
    cos_k, sin_k = rope_cos_sin(Sk, H)

    # Compose the two successive rotations of the reference into ONE rotation
    # (valid because the RoPE cache cos/sin are half-symmetric per head), and
    # fold the 1/sqrt(head_dim) score scale into the Q tables.
    cq = (cos_q * cos_q - sin_q * sin_q) * scale
    sq = (2.0 * sin_q * cos_q) * scale
    ck = cos_q * cos_k - sin_q * sin_k
    sk = sin_q * cos_k + cos_q * sin_k

    # rotate_half(x) per head == roll(x,+h) on the upper half-lanes and
    # -roll(x,-h) on the lower half-lanes of every head; fold the half masks and
    # signs into the sin tables so the kernel only needs two lane rolls + FMAs.
    j = jnp.arange(H)
    hi = (j >= h).astype(jnp.float32)
    lo = (j < h).astype(jnp.float32)

    def tile(t):  # (S, H) per-head table -> flat (S, E)
        return jnp.tile(t, (1, num_heads))

    CQ, SQH, SQL = tile(cq), tile(sq * hi), tile(-sq * lo)
    CK, SKH, SKL = tile(ck), tile(sk * hi), tile(-sk * lo)

    # MXU operands in bf16 (halves weight DMA / resident VMEM, native MXU rate
    # on v6e/v7x); biases, RoPE tables and softmax stay f32 on the VPU/EUP path.
    wq = params["wq_t"].astype(mxu_dtype)
    wk = params["wk_t"].astype(mxu_dtype)
    wv = params["wv_t"].astype(mxu_dtype)
    wo = params["wo_t"].astype(mxu_dtype)
    bq = params["bq"].reshape(1, E).astype(jnp.float32)
    bk = params["bk"].reshape(1, E).astype(jnp.float32)
    bv = params["bv"].reshape(1, E).astype(jnp.float32)
    bo = params["bo"].reshape(1, E).astype(jnp.float32)

    approx_recip = bool(mxu_dtype != jnp.float32)
    kernel = functools.partial(_mha_kernel, num_heads, approx_recip)

    mat_spec = pl.BlockSpec((E, E), lambda b: (0, 0))
    bias_spec = pl.BlockSpec((1, E), lambda b: (0, 0))
    tabq_spec = pl.BlockSpec((Sq, E), lambda b: (0, 0))
    tabk_spec = pl.BlockSpec((Sk, E), lambda b: (0, 0))

    return pl.pallas_call(
        kernel,
        out_shape=jax.ShapeDtypeStruct((B, Sq, E), query.dtype),
        grid=(B,),
        in_specs=[
            pl.BlockSpec((None, Sq, E), lambda b: (b, 0, 0)),   # query
            pl.BlockSpec((None, Sk, E), lambda b: (b, 0, 0)),   # key
            pl.BlockSpec((None, Sv, E), lambda b: (b, 0, 0)),   # value
            mat_spec, mat_spec, mat_spec, mat_spec,             # Wq, Wk, Wv, Wo
            bias_spec, bias_spec, bias_spec, bias_spec,         # bq, bk, bv, bo
            tabq_spec, tabq_spec, tabq_spec,                    # CQ, SQH, SQL
            tabk_spec, tabk_spec, tabk_spec,                    # CK, SKH, SKL
        ],
        out_specs=pl.BlockSpec((None, Sq, E), lambda b: (b, 0, 0)),
        compiler_params=pltpu.CompilerParams(
            dimension_semantics=("parallel",),          # batch shards across TCs
            vmem_limit_bytes=_vmem_limit_bytes(),
        ),
    )(query, key, value, wq, wk, wv, wo, bq, bk, bv, bo,
      CQ, SQH, SQL, CK, SKH, SKL)


# ------------------------------ Pure-JAX reference --------------------------------

def mha_reference(params, query, key, value, num_heads):
    B, Sq, E = query.shape
    _, Sk, _ = key.shape
    H = E // num_heads

    Q = query.reshape(B * Sq, E) @ params["wq_t"] + params["bq"]
    K = key.reshape(B * Sk, E) @ params["wk_t"] + params["bk"]
    V = value.reshape(B * Sk, E) @ params["wv_t"] + params["bv"]
    Q = Q.reshape(B, Sq, num_heads, H).transpose(0, 2, 1, 3)
    K = K.reshape(B, Sk, num_heads, H).transpose(0, 2, 1, 3)
    V = V.reshape(B, Sk, num_heads, H).transpose(0, 2, 1, 3)

    cos_q, sin_q = rope_cos_sin(Sq, H)
    cos_k, sin_k = rope_cos_sin(Sk, H)
    cos_q, sin_q = cos_q[None, None], sin_q[None, None]
    cos_k, sin_k = cos_k[None, None], sin_k[None, None]

    # Faithful to the reference: RoPE applied twice (apply_rotary_emb then the
    # explicit second rotation in forward()).
    Q = _rope(Q, cos_q, sin_q)
    K = _rope(K, cos_q, sin_q)
    Q = _rope(Q, cos_q, sin_q)
    K = _rope(K, cos_k, sin_k)

    scores = jnp.einsum("bnqh,bnkh->bnqk", Q, K) / math.sqrt(float(H))
    w = jax.nn.softmax(scores, axis=-1)
    out = jnp.einsum("bnqk,bnkh->bnqh", w, V)
    out = out.transpose(0, 2, 1, 3).reshape(B, Sq, E)
    return (out.reshape(B * Sq, E) @ params["wo_t"] + params["bo"]).reshape(B, Sq, E)


# -------------------------------------- main --------------------------------------

if __name__ == "__main__":
    B, S, E, N = 2, 8, 32, 4  # head_dim = 8
    key0 = jax.random.PRNGKey(0)
    keys = jax.random.split(key0, 12)

    bound = 1.0 / math.sqrt(E)

    def init_w(k):
        # torch nn.Linear weight layout is (out, in); store transposed (in, out).
        return jax.random.uniform(k, (E, E), jnp.float32, -bound, bound).T

    def init_b(k):
        return jax.random.uniform(k, (E,), jnp.float32, -bound, bound)

    params = {
        "wq_t": init_w(keys[0]), "bq": init_b(keys[1]),
        "wk_t": init_w(keys[2]), "bk": init_b(keys[3]),
        "wv_t": init_w(keys[4]), "bv": init_b(keys[5]),
        "wo_t": init_w(keys[6]), "bo": init_b(keys[7]),
    }

    query = jax.random.normal(keys[8], (B, S, E), jnp.float32)
    key_in = jax.random.normal(keys[9], (B, S, E), jnp.float32)
    value = jax.random.normal(keys[10], (B, S, E), jnp.float32)

    ref = mha_reference(params, query, key_in, value, N)

    # Precise path (f32 MXU operands, exact reciprocal): tight correctness check.
    out_f32 = jax.block_until_ready(
        mha_forward(params, query, key_in, value, N, mxu_dtype=jnp.float32))
    assert out_f32.shape == (B, S, E), out_f32.shape
    assert jnp.allclose(out_f32, ref, rtol=1e-3, atol=1e-4), \
        float(jnp.max(jnp.abs(out_f32 - ref)))

    # Fast path (bf16 MXU operands + approx EUP reciprocal): looser check.
    out_bf16 = jax.block_until_ready(
        mha_forward(params, query, key_in, value, N, mxu_dtype=jnp.bfloat16))
    assert out_bf16.shape == (B, S, E), out_bf16.shape
    assert bool(jnp.all(jnp.isfinite(out_bf16)))
    assert jnp.allclose(out_bf16, ref, rtol=8e-2, atol=8e-2), \
        float(jnp.max(jnp.abs(out_bf16 - ref)))

    print("KERNEL_OK")
</pallas_src>

<mosaic_0001>
module attributes {stable_mosaic.version = 11 : i64} {
  func.func @_mha_kernel(%arg0: i32, %arg1: memref<1x8x32xf32, #tpu.memory_space<vmem>>, %arg2: memref<1x8x32xf32, #tpu.memory_space<vmem>>, %arg3: memref<1x8x32xf32, #tpu.memory_space<vmem>>, %arg4: memref<32x32xf32, #tpu.memory_space<vmem>>, %arg5: memref<32x32xf32, #tpu.memory_space<vmem>>, %arg6: memref<32x32xf32, #tpu.memory_space<vmem>>, %arg7: memref<32x32xf32, #tpu.memory_space<vmem>>, %arg8: memref<1x32xf32, #tpu.memory_space<vmem>>, %arg9: memref<1x32xf32, #tpu.memory_space<vmem>>, %arg10: memref<1x32xf32, #tpu.memory_space<vmem>>, %arg11: memref<1x32xf32, #tpu.memory_space<vmem>>, %arg12: memref<8x32xf32, #tpu.memory_space<vmem>>, %arg13: memref<8x32xf32, #tpu.memory_space<vmem>>, %arg14: memref<8x32xf32, #tpu.memory_space<vmem>>, %arg15: memref<8x32xf32, #tpu.memory_space<vmem>>, %arg16: memref<8x32xf32, #tpu.memory_space<vmem>>, %arg17: memref<8x32xf32, #tpu.memory_space<vmem>>, %arg18: memref<1x8x32xf32, #tpu.memory_space<vmem>>) attributes {dimension_semantics = [#tpu.dimension_semantics<parallel>], iteration_bounds = array<i64: 2>, scalar_prefetch = 0 : i64, scratch_operands = 0 : i64, tpu.core_type = #tpu.core_type<tc>, window_params = [{transform_indices = @transform_0, window_bounds = array<i64: 1, 8, 32>}, {transform_indices = @transform_1, window_bounds = array<i64: 1, 8, 32>}, {transform_indices = @transform_2, window_bounds = array<i64: 1, 8, 32>}, {pipeline_mode = #tpu.pipeline_mode<synchronous>, transform_indices = @transform_3, window_bounds = array<i64: 32, 32>}, {pipeline_mode = #tpu.pipeline_mode<synchronous>, transform_indices = @transform_4, window_bounds = array<i64: 32, 32>}, {pipeline_mode = #tpu.pipeline_mode<synchronous>, transform_indices = @transform_5, window_bounds = array<i64: 32, 32>}, {pipeline_mode = #tpu.pipeline_mode<synchronous>, transform_indices = @transform_6, window_bounds = array<i64: 32, 32>}, {pipeline_mode = #tpu.pipeline_mode<synchronous>, transform_indices = @transform_7, window_bounds = array<i64: 1, 32>}, {pipeline_mode = #tpu.pipeline_mode<synchronous>, transform_indices = @transform_8, window_bounds = array<i64: 1, 32>}, {pipeline_mode = #tpu.pipeline_mode<synchronous>, transform_indices = @transform_9, window_bounds = array<i64: 1, 32>}, {pipeline_mode = #tpu.pipeline_mode<synchronous>, transform_indices = @transform_10, window_bounds = array<i64: 1, 32>}, {pipeline_mode = #tpu.pipeline_mode<synchronous>, transform_indices = @transform_11, window_bounds = array<i64: 8, 32>}, {pipeline_mode = #tpu.pipeline_mode<synchronous>, transform_indices = @transform_12, window_bounds = array<i64: 8, 32>}, {pipeline_mode = #tpu.pipeline_mode<synchronous>, transform_indices = @transform_13, window_bounds = array<i64: 8, 32>}, {pipeline_mode = #tpu.pipeline_mode<synchronous>, transform_indices = @transform_14, window_bounds = array<i64: 8, 32>}, {pipeline_mode = #tpu.pipeline_mode<synchronous>, transform_indices = @transform_15, window_bounds = array<i64: 8, 32>}, {pipeline_mode = #tpu.pipeline_mode<synchronous>, transform_indices = @transform_16, window_bounds = array<i64: 8, 32>}, {transform_indices = @transform_17, window_bounds = array<i64: 1, 8, 32>}]} {
    %c0 = arith.constant 0 : index
    %c0_0 = arith.constant 0 : index
    %c0_1 = arith.constant 0 : index
    %0 = vector.load %arg1[%c0, %c0_0, %c0_1] : memref<1x8x32xf32, #tpu.memory_space<vmem>>, vector<1x8x32xf32>
    %1 = vector.shape_cast %0 : vector<1x8x32xf32> to vector<8x32xf32>
    %c0_2 = arith.constant 0 : index
    %c0_3 = arith.constant 0 : index
    %2 = vector.load %arg4[%c0_2, %c0_3] : memref<32x32xf32, #tpu.memory_space<vmem>>, vector<32x32xf32>
    %cst = arith.constant dense<0.000000e+00> : vector<8x32xf32>
    %3 = tpu.matmul %1, %2, %cst {dimension_numbers = #tpu.dot_dimension_numbers<[1], [0], [0], [1], [0, 0, 1, 1], [], []>} : vector<8x32xf32>, vector<32x32xf32>, vector<8x32xf32> -> vector<8x32xf32>
    %c0_4 = arith.constant 0 : index
    %c0_5 = arith.constant 0 : index
    %4 = vector.load %arg8[%c0_4, %c0_5] : memref<1x32xf32, #tpu.memory_space<vmem>>, vector<1x32xf32>
    %5 = vector.broadcast %4 : vector<1x32xf32> to vector<8x32xf32>
    %6 = arith.addf %3, %5 : vector<8x32xf32>
    %c0_6 = arith.constant 0 : index
    %c0_7 = arith.constant 0 : index
    %c0_8 = arith.constant 0 : index
    %7 = vector.load %arg2[%c0_6, %c0_7, %c0_8] : memref<1x8x32xf32, #tpu.memory_space<vmem>>, vector<1x8x32xf32>
    %8 = vector.shape_cast %7 : vector<1x8x32xf32> to vector<8x32xf32>
    %c0_9 = arith.constant 0 : index
    %c0_10 = arith.constant 0 : index
    %9 = vector.load %arg5[%c0_9, %c0_10] : memref<32x32xf32, #tpu.memory_space<vmem>>, vector<32x32xf32>
    %cst_11 = arith.constant dense<0.000000e+00> : vector<8x32xf32>
    %10 = tpu.matmul %8, %9, %cst_11 {dimension_numbers = #tpu.dot_dimension_numbers<[1], [0], [0], [1], [0, 0, 1, 1], [], []>} : vector<8x32xf32>, vector<32x32xf32>, vector<8x32xf32> -> vector<8x32xf32>
    %c0_12 = arith.constant 0 : index
    %c0_13 = arith.constant 0 : index
    %11 = vector.load %arg9[%c0_12, %c0_13] : memref<1x32xf32, #tpu.memory_space<vmem>>, vector<1x32xf32>
    %12 = vector.broadcast %11 : vector<1x32xf32> to vector<8x32xf32>
    %13 = arith.addf %10, %12 : vector<8x32xf32>
    %c0_14 = arith.constant 0 : index
    %c0_15 = arith.constant 0 : index
    %c0_16 = arith.constant 0 : index
    %14 = vector.load %arg3[%c0_14, %c0_15, %c0_16] : memref<1x8x32xf32, #tpu.memory_space<vmem>>, vector<1x8x32xf32>
    %15 = vector.shape_cast %14 : vector<1x8x32xf32> to vector<8x32xf32>
    %c0_17 = arith.constant 0 : index
    %c0_18 = arith.constant 0 : index
    %16 = vector.load %arg6[%c0_17, %c0_18] : memref<32x32xf32, #tpu.memory_space<vmem>>, vector<32x32xf32>
    %cst_19 = arith.constant dense<0.000000e+00> : vector<8x32xf32>
    %17 = tpu.matmul %15, %16, %cst_19 {dimension_numbers = #tpu.dot_dimension_numbers<[1], [0], [0], [1], [0, 0, 1, 1], [], []>} : vector<8x32xf32>, vector<32x32xf32>, vector<8x32xf32> -> vector<8x32xf32>
    %c0_20 = arith.constant 0 : index
    %c0_21 = arith.constant 0 : index
    %18 = vector.load %arg10[%c0_20, %c0_21] : memref<1x32xf32, #tpu.memory_space<vmem>>, vector<1x32xf32>
    %19 = vector.broadcast %18 : vector<1x32xf32> to vector<8x32xf32>
    %20 = arith.addf %17, %19 : vector<8x32xf32>
    %c0_22 = arith.constant 0 : index
    %c0_23 = arith.constant 0 : index
    %21 = vector.load %arg12[%c0_22, %c0_23] : memref<8x32xf32, #tpu.memory_space<vmem>>, vector<8x32xf32>
    %22 = arith.mulf %6, %21 : vector<8x32xf32>
    %23 = vector.extract_strided_slice %6 {offsets = [0, 28], sizes = [8, 4], strides = [1, 1]} : vector<8x32xf32> to vector<8x4xf32>
    %24 = vector.extract_strided_slice %6 {offsets = [0, 0], sizes = [8, 28], strides = [1, 1]} : vector<8x32xf32> to vector<8x28xf32>
    %25 = tpu.concatenate %23, %24 in 1 : vector<8x4xf32>, vector<8x28xf32> -> vector<8x32xf32>
    %c0_24 = arith.constant 0 : index
    %c0_25 = arith.constant 0 : index
    %26 = vector.load %arg13[%c0_24, %c0_25] : memref<8x32xf32, #tpu.memory_space<vmem>>, vector<8x32xf32>
    %27 = arith.mulf %25, %26 : vector<8x32xf32>
    %28 = arith.addf %22, %27 : vector<8x32xf32>
    %29 = vector.extract_strided_slice %6 {offsets = [0, 4], sizes = [8, 28], strides = [1, 1]} : vector<8x32xf32> to vector<8x28xf32>
    %30 = vector.extract_strided_slice %6 {offsets = [0, 0], sizes = [8, 4], strides = [1, 1]} : vector<8x32xf32> to vector<8x4xf32>
    %31 = tpu.concatenate %29, %30 in 1 : vector<8x28xf32>, vector<8x4xf32> -> vector<8x32xf32>
    %c0_26 = arith.constant 0 : index
    %c0_27 = arith.constant 0 : index
    %32 = vector.load %arg14[%c0_26, %c0_27] : memref<8x32xf32, #tpu.memory_space<vmem>>, vector<8x32xf32>
    %33 = arith.mulf %31, %32 : vector<8x32xf32>
    %34 = arith.addf %28, %33 : vector<8x32xf32>
    %c0_28 = arith.constant 0 : index
    %c0_29 = arith.constant 0 : index
    %35 = vector.load %arg15[%c0_28, %c0_29] : memref<8x32xf32, #tpu.memory_space<vmem>>, vector<8x32xf32>
    %36 = arith.mulf %13, %35 : vector<8x32xf32>
    %37 = vector.extract_strided_slice %13 {offsets = [0, 28], sizes = [8, 4], strides = [1, 1]} : vector<8x32xf32> to vector<8x4xf32>
    %38 = vector.extract_strided_slice %13 {offsets = [0, 0], sizes = [8, 28], strides = [1, 1]} : vector<8x32xf32> to vector<8x28xf32>
    %39 = tpu.concatenate %37, %38 in 1 : vector<8x4xf32>, vector<8x28xf32> -> vector<8x32xf32>
    %c0_30 = arith.constant 0 : index
    %c0_31 = arith.constant 0 : index
    %40 = vector.load %arg16[%c0_30, %c0_31] : memref<8x32xf32, #tpu.memory_space<vmem>>, vector<8x32xf32>
    %41 = arith.mulf %39, %40 : vector<8x32xf32>
    %42 = arith.addf %36, %41 : vector<8x32xf32>
    %43 = vector.extract_strided_slice %13 {offsets = [0, 4], sizes = [8, 28], strides = [1, 1]} : vector<8x32xf32> to vector<8x28xf32>
    %44 = vector.extract_strided_slice %13 {offsets = [0, 0], sizes = [8, 4], strides = [1, 1]} : vector<8x32xf32> to vector<8x4xf32>
    %45 = tpu.concatenate %43, %44 in 1 : vector<8x28xf32>, vector<8x4xf32> -> vector<8x32xf32>
    %c0_32 = arith.constant 0 : index
    %c0_33 = arith.constant 0 : index
    %46 = vector.load %arg17[%c0_32, %c0_33] : memref<8x32xf32, #tpu.memory_space<vmem>>, vector<8x32xf32>
    %47 = arith.mulf %45, %46 : vector<8x32xf32>
    %48 = arith.addf %42, %47 : vector<8x32xf32>
    %c0_34 = arith.constant 0 : index
    %c0_35 = arith.constant 0 : index
    %49 = vector.load %arg7[%c0_34, %c0_35] : memref<32x32xf32, #tpu.memory_space<vmem>>, vector<32x32xf32>
    %cst_36 = arith.constant 0.000000e+00 : f32
    %50 = vector.broadcast %cst_36 : f32 to vector<8x32xf32>
    %51 = vector.extract_strided_slice %34 {offsets = [0, 0], sizes = [8, 8], strides = [1, 1]} : vector<8x32xf32> to vector<8x8xf32>
    %52 = vector.extract_strided_slice %48 {offsets = [0, 0], sizes = [8, 8], strides = [1, 1]} : vector<8x32xf32> to vector<8x8xf32>
    %cst_37 = arith.constant dense<0.000000e+00> : vector<8x8xf32>
    %53 = tpu.matmul %51, %52, %cst_37 {dimension_numbers = #tpu.dot_dimension_numbers<[1], [1], [0], [0], [0, 0, 1, 0], [], []>} : vector<8x8xf32>, vector<8x8xf32>, vector<8x8xf32> -> vector<8x8xf32>
    %cst_38 = arith.constant dense<0xFF800000> : vector<8xf32>
    %54 = vector.multi_reduction <maximumf>, %53, %cst_38 [1] : vector<8x8xf32> to vector<8xf32>
    %55 = vector.shape_cast %54 : vector<8xf32> to vector<8x1xf32>
    %56 = vector.broadcast %55 : vector<8x1xf32> to vector<8x8xf32>
    %57 = arith.subf %53, %56 : vector<8x8xf32>
    %58 = math.exp %57 : vector<8x8xf32>
    %cst_39 = arith.constant dense<0.000000e+00> : vector<8xf32>
    %59 = vector.multi_reduction <add>, %58, %cst_39 [1] : vector<8x8xf32> to vector<8xf32>
    %60 = vector.shape_cast %59 : vector<8xf32> to vector<8x1xf32>
    %61 = tpu.reciprocal %60 : vector<8x1xf32> -> vector<8x1xf32>
    %62 = vector.broadcast %61 : vector<8x1xf32> to vector<8x8xf32>
    %63 = arith.mulf %58, %62 : vector<8x8xf32>
    %64 = vector.extract_strided_slice %20 {offsets = [0, 0], sizes = [8, 8], strides = [1, 1]} : vector<8x32xf32> to vector<8x8xf32>
    %cst_40 = arith.constant dense<0.000000e+00> : vector<8x8xf32>
    %65 = tpu.matmul %63, %64, %cst_40 {dimension_numbers = #tpu.dot_dimension_numbers<[1], [0], [0], [1], [0, 0, 1, 1], [], []>} : vector<8x8xf32>, vector<8x8xf32>, vector<8x8xf32> -> vector<8x8xf32>
    %66 = vector.extract_strided_slice %49 {offsets = [0, 0], sizes = [8, 32], strides = [1, 1]} : vector<32x32xf32> to vector<8x32xf32>
    %cst_41 = arith.constant dense<0.000000e+00> : vector<8x32xf32>
    %67 = tpu.matmul %65, %66, %cst_41 {dimension_numbers = #tpu.dot_dimension_numbers<[1], [0], [0], [1], [0, 0, 1, 1], [], []>} : vector<8x8xf32>, vector<8x32xf32>, vector<8x32xf32> -> vector<8x32xf32>
    %68 = arith.addf %50, %67 : vector<8x32xf32>
    %69 = vector.extract_strided_slice %34 {offsets = [0, 8], sizes = [8, 8], strides = [1, 1]} : vector<8x32xf32> to vector<8x8xf32>
    %70 = vector.extract_strided_slice %48 {offsets = [0, 8], sizes = [8, 8], strides = [1, 1]} : vector<8x32xf32> to vector<8x8xf32>
    %cst_42 = arith.constant dense<0.000000e+00> : vector<8x8xf32>
    %71 = tpu.matmul %69, %70, %cst_42 {dimension_numbers = #tpu.dot_dimension_numbers<[1], [1], [0], [0], [0, 0, 1, 0], [], []>} : vector<8x8xf32>, vector<8x8xf32>, vector<8x8xf32> -> vector<8x8xf32>
    %cst_43 = arith.constant dense<0xFF800000> : vector<8xf32>
    %72 = vector.multi_reduction <maximumf>, %71, %cst_43 [1] : vector<8x8xf32> to vector<8xf32>
    %73 = vector.shape_cast %72 : vector<8xf32> to vector<8x1xf32>
    %74 = vector.broadcast %73 : vector<8x1xf32> to vector<8x8xf32>
    %75 = arith.subf %71, %74 : vector<8x8xf32>
    %76 = math.exp %75 : vector<8x8xf32>
    %cst_44 = arith.constant dense<0.000000e+00> : vector<8xf32>
    %77 = vector.multi_reduction <add>, %76, %cst_44 [1] : vector<8x8xf32> to vector<8xf32>
    %78 = vector.shape_cast %77 : vector<8xf32> to vector<8x1xf32>
    %79 = tpu.reciprocal %78 : vector<8x1xf32> -> vector<8x1xf32>
    %80 = vector.broadcast %79 : vector<8x1xf32> to vector<8x8xf32>
    %81 = arith.mulf %76, %80 : vector<8x8xf32>
    %82 = vector.extract_strided_slice %20 {offsets = [0, 8], sizes = [8, 8], strides = [1, 1]} : vector<8x32xf32> to vector<8x8xf32>
    %cst_45 = arith.constant dense<0.000000e+00> : vector<8x8xf32>
    %83 = tpu.matmul %81, %82, %cst_45 {dimension_numbers = #tpu.dot_dimension_numbers<[1], [0], [0], [1], [0, 0, 1, 1], [], []>} : vector<8x8xf32>, vector<8x8xf32>, vector<8x8xf32> -> vector<8x8xf32>
    %84 = vector.extract_strided_slice %49 {offsets = [8, 0], sizes = [8, 32], strides = [1, 1]} : vector<32x32xf32> to vector<8x32xf32>
    %cst_46 = arith.constant dense<0.000000e+00> : vector<8x32xf32>
    %85 = tpu.matmul %83, %84, %cst_46 {dimension_numbers = #tpu.dot_dimension_numbers<[1], [0], [0], [1], [0, 0, 1, 1], [], []>} : vector<8x8xf32>, vector<8x32xf32>, vector<8x32xf32> -> vector<8x32xf32>
    %86 = arith.addf %68, %85 : vector<8x32xf32>
    %87 = vector.extract_strided_slice %34 {offsets = [0, 16], sizes = [8, 8], strides = [1, 1]} : vector<8x32xf32> to vector<8x8xf32>
    %88 = vector.extract_strided_slice %48 {offsets = [0, 16], sizes = [8, 8], strides = [1, 1]} : vector<8x32xf32> to vector<8x8xf32>
    %cst_47 = arith.constant dense<0.000000e+00> : vector<8x8xf32>
    %89 = tpu.matmul %87, %88, %cst_47 {dimension_numbers = #tpu.dot_dimension_numbers<[1], [1], [0], [0], [0, 0, 1, 0], [], []>} : vector<8x8xf32>, vector<8x8xf32>, vector<8x8xf32> -> vector<8x8xf32>
    %cst_48 = arith.constant dense<0xFF800000> : vector<8xf32>
    %90 = vector.multi_reduction <maximumf>, %89, %cst_48 [1] : vector<8x8xf32> to vector<8xf32>
    %91 = vector.shape_cast %90 : vector<8xf32> to vector<8x1xf32>
    %92 = vector.broadcast %91 : vector<8x1xf32> to vector<8x8xf32>
    %93 = arith.subf %89, %92 : vector<8x8xf32>
    %94 = math.exp %93 : vector<8x8xf32>
    %cst_49 = arith.constant dense<0.000000e+00> : vector<8xf32>
    %95 = vector.multi_reduction <add>, %94, %cst_49 [1] : vector<8x8xf32> to vector<8xf32>
    %96 = vector.shape_cast %95 : vector<8xf32> to vector<8x1xf32>
    %97 = tpu.reciprocal %96 : vector<8x1xf32> -> vector<8x1xf32>
    %98 = vector.broadcast %97 : vector<8x1xf32> to vector<8x8xf32>
    %99 = arith.mulf %94, %98 : vector<8x8xf32>
    %100 = vector.extract_strided_slice %20 {offsets = [0, 16], sizes = [8, 8], strides = [1, 1]} : vector<8x32xf32> to vector<8x8xf32>
    %cst_50 = arith.constant dense<0.000000e+00> : vector<8x8xf32>
    %101 = tpu.matmul %99, %100, %cst_50 {dimension_numbers = #tpu.dot_dimension_numbers<[1], [0], [0], [1], [0, 0, 1, 1], [], []>} : vector<8x8xf32>, vector<8x8xf32>, vector<8x8xf32> -> vector<8x8xf32>
    %102 = vector.extract_strided_slice %49 {offsets = [16, 0], sizes = [8, 32], strides = [1, 1]} : vector<32x32xf32> to vector<8x32xf32>
    %cst_51 = arith.constant dense<0.000000e+00> : vector<8x32xf32>
    %103 = tpu.matmul %101, %102, %cst_51 {dimension_numbers = #tpu.dot_dimension_numbers<[1], [0], [0], [1], [0, 0, 1, 1], [], []>} : vector<8x8xf32>, vector<8x32xf32>, vector<8x32xf32> -> vector<8x32xf32>
    %104 = arith.addf %86, %103 : vector<8x32xf32>
    %105 = vector.extract_strided_slice %34 {offsets = [0, 24], sizes = [8, 8], strides = [1, 1]} : vector<8x32xf32> to vector<8x8xf32>
    %106 = vector.extract_strided_slice %48 {offsets = [0, 24], sizes = [8, 8], strides = [1, 1]} : vector<8x32xf32> to vector<8x8xf32>
    %cst_52 = arith.constant dense<0.000000e+00> : vector<8x8xf32>
    %107 = tpu.matmul %105, %106, %cst_52 {dimension_numbers = #tpu.dot_dimension_numbers<[1], [1], [0], [0], [0, 0, 1, 0], [], []>} : vector<8x8xf32>, vector<8x8xf32>, vector<8x8xf32> -> vector<8x8xf32>
    %cst_53 = arith.constant dense<0xFF800000> : vector<8xf32>
    %108 = vector.multi_reduction <maximumf>, %107, %cst_53 [1] : vector<8x8xf32> to vector<8xf32>
    %109 = vector.shape_cast %108 : vector<8xf32> to vector<8x1xf32>
    %110 = vector.broadcast %109 : vector<8x1xf32> to vector<8x8xf32>
    %111 = arith.subf %107, %110 : vector<8x8xf32>
    %112 = math.exp %111 : vector<8x8xf32>
    %cst_54 = arith.constant dense<0.000000e+00> : vector<8xf32>
    %113 = vector.multi_reduction <add>, %112, %cst_54 [1] : vector<8x8xf32> to vector<8xf32>
    %114 = vector.shape_cast %113 : vector<8xf32> to vector<8x1xf32>
    %115 = tpu.reciprocal %114 : vector<8x1xf32> -> vector<8x1xf32>
    %116 = vector.broadcast %115 : vector<8x1xf32> to vector<8x8xf32>
    %117 = arith.mulf %112, %116 : vector<8x8xf32>
    %118 = vector.extract_strided_slice %20 {offsets = [0, 24], sizes = [8, 8], strides = [1, 1]} : vector<8x32xf32> to vector<8x8xf32>
    %cst_55 = arith.constant dense<0.000000e+00> : vector<8x8xf32>
    %119 = tpu.matmul %117, %118, %cst_55 {dimension_numbers = #tpu.dot_dimension_numbers<[1], [0], [0], [1], [0, 0, 1, 1], [], []>} : vector<8x8xf32>, vector<8x8xf32>, vector<8x8xf32> -> vector<8x8xf32>
    %120 = vector.extract_strided_slice %49 {offsets = [24, 0], sizes = [8, 32], strides = [1, 1]} : vector<32x32xf32> to vector<8x32xf32>
    %cst_56 = arith.constant dense<0.000000e+00> : vector<8x32xf32>
    %121 = tpu.matmul %119, %120, %cst_56 {dimension_numbers = #tpu.dot_dimension_numbers<[1], [0], [0], [1], [0, 0, 1, 1], [], []>} : vector<8x8xf32>, vector<8x32xf32>, vector<8x32xf32> -> vector<8x32xf32>
    %122 = arith.addf %104, %121 : vector<8x32xf32>
    %c0_57 = arith.constant 0 : index
    %c0_58 = arith.constant 0 : index
    %123 = vector.load %arg11[%c0_57, %c0_58] : memref<1x32xf32, #tpu.memory_space<vmem>>, vector<1x32xf32>
    %124 = vector.broadcast %123 : vector<1x32xf32> to vector<8x32xf32>
    %125 = arith.addf %122, %124 : vector<8x32xf32>
    %c0_59 = arith.constant 0 : index
    %c0_60 = arith.constant 0 : index
    %c0_61 = arith.constant 0 : index
    %126 = vector.load %arg18[%c0_59, %c0_60, %c0_61] : memref<1x8x32xf32, #tpu.memory_space<vmem>>, vector<1x8x32xf32>
    %127 = vector.shape_cast %126 : vector<1x8x32xf32> to vector<8x32xf32>
    %128 = vector.shape_cast %125 : vector<8x32xf32> to vector<1x8x32xf32>
    tpu.vector_store %arg18[%c0_59, %c0_60, %c0_61], %128 {strides = array<i32>} : memref<1x8x32xf32, #tpu.memory_space<vmem>>, vector<1x8x32xf32>,
    return
  }
  func.func @transform_0(%arg0: i32) -> (i32, i32, i32) {
    %c0_i32 = arith.constant 0 : i32
    %c0_i32_0 = arith.constant 0 : i32
    %c0_i32_1 = arith.constant 0 : i32
    return %arg0, %c0_i32, %c0_i32_0 : i32, i32, i32
  }
  func.func @transform_1(%arg0: i32) -> (i32, i32, i32) {
    %c0_i32 = arith.constant 0 : i32
    %c0_i32_0 = arith.constant 0 : i32
    %c0_i32_1 = arith.constant 0 : i32
    return %arg0, %c0_i32, %c0_i32_0 : i32, i32, i32
  }
  func.func @transform_2(%arg0: i32) -> (i32, i32, i32) {
    %c0_i32 = arith.constant 0 : i32
    %c0_i32_0 = arith.constant 0 : i32
    %c0_i32_1 = arith.constant 0 : i32
    return %arg0, %c0_i32, %c0_i32_0 : i32, i32, i32
  }
  func.func @transform_3(%arg0: i32) -> (i32, i32) {
    %c0_i32 = arith.constant 0 : i32
    %c0_i32_0 = arith.constant 0 : i32
    %c0_i32_1 = arith.constant 0 : i32
    return %c0_i32, %c0_i32_0 : i32, i32
  }
  func.func @transform_4(%arg0: i32) -> (i32, i32) {
    %c0_i32 = arith.constant 0 : i32
    %c0_i32_0 = arith.constant 0 : i32
    %c0_i32_1 = arith.constant 0 : i32
    return %c0_i32, %c0_i32_0 : i32, i32
  }
  func.func @transform_5(%arg0: i32) -> (i32, i32) {
    %c0_i32 = arith.constant 0 : i32
    %c0_i32_0 = arith.constant 0 : i32
    %c0_i32_1 = arith.constant 0 : i32
    return %c0_i32, %c0_i32_0 : i32, i32
  }
  func.func @transform_6(%arg0: i32) -> (i32, i32) {
    %c0_i32 = arith.constant 0 : i32
    %c0_i32_0 = arith.constant 0 : i32
    %c0_i32_1 = arith.constant 0 : i32
    return %c0_i32, %c0_i32_0 : i32, i32
  }
  func.func @transform_7(%arg0: i32) -> (i32, i32) {
    %c0_i32 = arith.constant 0 : i32
    %c0_i32_0 = arith.constant 0 : i32
    %c0_i32_1 = arith.constant 0 : i32
    return %c0_i32, %c0_i32_0 : i32, i32
  }
  func.func @transform_8(%arg0: i32) -> (i32, i32) {
    %c0_i32 = arith.constant 0 : i32
    %c0_i32_0 = arith.constant 0 : i32
    %c0_i32_1 = arith.constant 0 : i32
    return %c0_i32, %c0_i32_0 : i32, i32
  }
  func.func @transform_9(%arg0: i32) -> (i32, i32) {
    %c0_i32 = arith.constant 0 : i32
    %c0_i32_0 = arith.constant 0 : i32
    %c0_i32_1 = arith.constant 0 : i32
    return %c0_i32, %c0_i32_0 : i32, i32
  }
  func.func @transform_10(%arg0: i32) -> (i32, i32) {
    %c0_i32 = arith.constant 0 : i32
    %c0_i32_0 = arith.constant 0 : i32
    %c0_i32_1 = arith.constant 0 : i32
    return %c0_i32, %c0_i32_0 : i32, i32
  }
  func.func @transform_11(%arg0: i32) -> (i32, i32) {
    %c0_i32 = arith.constant 0 : i32
    %c0_i32_0 = arith.constant 0 : i32
    %c0_i32_1 = arith.constant 0 : i32
    return %c0_i32, %c0_i32_0 : i32, i32
  }
  func.func @transform_12(%arg0: i32) -> (i32, i32) {
    %c0_i32 = arith.constant 0 : i32
    %c0_i32_0 = arith.constant 0 : i32
    %c0_i32_1 = arith.constant 0 : i32
    return %c0_i32, %c0_i32_0 : i32, i32
  }
  func.func @transform_13(%arg0: i32) -> (i32, i32) {
    %c0_i32 = arith.constant 0 : i32
    %c0_i32_0 = arith.constant 0 : i32
    %c0_i32_1 = arith.constant 0 : i32
    return %c0_i32, %c0_i32_0 : i32, i32
  }
  func.func @transform_14(%arg0: i32) -> (i32, i32) {
    %c0_i32 = arith.constant 0 : i32
    %c0_i32_0 = arith.constant 0 : i32
    %c0_i32_1 = arith.constant 0 : i32
    return %c0_i32, %c0_i32_0 : i32, i32
  }
  func.func @transform_15(%arg0: i32) -> (i32, i32) {
    %c0_i32 = arith.constant 0 : i32
    %c0_i32_0 = arith.constant 0 : i32
    %c0_i32_1 = arith.constant 0 : i32
    return %c0_i32, %c0_i32_0 : i32, i32
  }
  func.func @transform_16(%arg0: i32) -> (i32, i32) {
    %c0_i32 = arith.constant 0 : i32
    %c0_i32_0 = arith.constant 0 : i32
    %c0_i32_1 = arith.constant 0 : i32
    return %c0_i32, %c0_i32_0 : i32, i32
  }
  func.func @transform_17(%arg0: i32) -> (i32, i32, i32) {
    %c0_i32 = arith.constant 0 : i32
    %c0_i32_0 = arith.constant 0 : i32
    %c0_i32_1 = arith.constant 0 : i32
    return %arg0, %c0_i32, %c0_i32_0 : i32, i32, i32
  }
}

</mosaic_0001>

<llo_original>
// kernel: tpu_custom_call.1
$region0: #{tpu_custom_call.1}
  #allocation0 [shape = 'u32[]', space=smem, size = 0x4, offset = 0x4, fixed_abs, tag = 'smem constant byte address 0x4 - core index']
  #allocation1 [shape = 'u32[144,128]{1,0:T(1,128)}', space=vmem, size = 0x12000, scoped, tag = 'internal scratch']
  %s0 = inlined_call_operand.hbm [shape: f32[2,8,32], index: 0, kind: input, shape index: {}]
  %s1 = inlined_call_operand.hbm [shape: f32[2,8,32], index: 1, kind: input, shape index: {}]
  %s2 = inlined_call_operand.hbm [shape: f32[2,8,32], index: 2, kind: input, shape index: {}]
  %s3 = inlined_call_operand.hbm [shape: f32[32,32], index: 3, kind: input, shape index: {}]
  %s4 = inlined_call_operand.hbm [shape: f32[32,32], index: 4, kind: input, shape index: {}]
  %s5 = inlined_call_operand.hbm [shape: f32[32,32], index: 5, kind: input, shape index: {}]
  %s6 = inlined_call_operand.hbm [shape: f32[32,32], index: 6, kind: input, shape index: {}]
  %s7 = inlined_call_operand.vmem [shape: f32[1,32], index: 7, kind: input, shape index: {}]
  %s8 = inlined_call_operand.hbm [shape: f32[1,32], index: 8, kind: input, shape index: {}]
  %s9 = inlined_call_operand.hbm [shape: f32[1,32], index: 9, kind: input, shape index: {}]
  %s10 = inlined_call_operand.hbm [shape: f32[1,32], index: 10, kind: input, shape index: {}]
  %s11 = inlined_call_operand.vmem [shape: f32[8,32], index: 11, kind: input, shape index: {}]
  %s12 = inlined_call_operand.vmem [shape: f32[8,32], index: 12, kind: input, shape index: {}]
  %s13 = inlined_call_operand.vmem [shape: f32[8,32], index: 13, kind: input, shape index: {}]
  %s14 = inlined_call_operand.vmem [shape: f32[8,32], index: 14, kind: input, shape index: {}]
  %s15 = inlined_call_operand.vmem [shape: f32[8,32], index: 15, kind: input, shape index: {}]
  %s16 = inlined_call_operand.vmem [shape: f32[8,32], index: 16, kind: input, shape index: {}]
  %s17 = inlined_call_operand.hbm [shape: f32[2,8,32], index: 17, kind: output, shape index: {}]
  %s18 = sld [smem:[#allocation0]]
  $region141: #{tpu_custom_call.1} parent=0
    _
  %s20 = ssub.s32 1, %s18
  %s21 = scalar_select 0, %s20, %s18
  $region1: #{tpu_custom_call.1} parent=0
    #allocation2 [shape = 'u8[8192]{0}', space=vmem, size = 0x2000, scoped, tag = 'input window, operand 0']
    #allocation3 [shape = 's32[2]{0}', space=sflag, size = 0x8, scoped, tag = 'scoped memory for tpu_custom_call.1']
    #allocation4 [shape = 's32[2]{0}', space=sflag, size = 0x8, scoped, tag = 'scoped memory for tpu_custom_call.1']
    #allocation5 [shape = 'u8[8192]{0}', space=vmem, size = 0x2000, scoped, tag = 'input window, operand 1']
    #allocation6 [shape = 's32[2]{0}', space=sflag, size = 0x8, scoped, tag = 'scoped memory for tpu_custom_call.1']
    #allocation7 [shape = 'u8[8192]{0}', space=vmem, size = 0x2000, scoped, tag = 'input window, operand 2']
    #allocation8 [shape = 'u8[16384]{0}', space=vmem, size = 0x4000, scoped, tag = 'input window, operand 3, single buffered']
    #allocation9 [shape = 's32[1]{0}', space=sflag, size = 0x4, scoped, tag = 'scoped memory for tpu_custom_call.1']
    #allocation10 [shape = 'u8[16384]{0}', space=vmem, size = 0x4000, scoped, tag = 'input window, operand 4, single buffered']
    #allocation11 [shape = 'u8[16384]{0}', space=vmem, size = 0x4000, scoped, tag = 'input window, operand 5, single buffered']
    #allocation12 [shape = 's32[1]{0}', space=sflag, size = 0x4, scoped, tag = 'scoped memory for tpu_custom_call.1']
    #allocation13 [shape = 'u8[16384]{0}', space=vmem, size = 0x4000, scoped, tag = 'input window, operand 6, single buffered']
    #allocation14 [shape = 'u8[512]{0}', space=vmem, size = 0x400, scoped, tag = 'input window, operand 8, single buffered']
    #allocation15 [shape = 's32[1]{0}', space=sflag, size = 0x4, scoped, tag = 'scoped memory for tpu_custom_call.1']
    #allocation16 [shape = 'u8[512]{0}', space=vmem, size = 0x400, scoped, tag = 'input window, operand 9, single buffered']
    #allocation17 [shape = 'u8[512]{0}', space=vmem, size = 0x400, scoped, tag = 'input window, operand 10, single buffered']
    #allocation18 [shape = 's32[1]{0}', space=sflag, size = 0x4, scoped, tag = 'scoped memory for tpu_custom_call.1']
    #allocation19 [shape = 'u8[8192]{0}', space=vmem, size = 0x2000, scoped, tag = 'output window, operand 0']
    %22 = vsyncpa [#allocation3], 0
    %s23 = scalar_lea.sflag [#allocation3], 1
    %24 = vsyncpa %s23, 0
    %25 = vsyncpa [#allocation6], 0
    %s26 = scalar_lea.sflag [#allocation6], 1
    %27 = vsyncpa %s26, 0
    %28 = vsyncpa [#allocation9], 0
    %29 = vsyncpa [#allocation12], 0
    %30 = vsyncpa [#allocation15], 0
    %31 = vsyncpa [#allocation18], 0
    %32 = vsyncpa [#allocation4], 0
    %s33 = scalar_lea.sflag [#allocation4], 1
    %34 = vsyncpa %s33, 0
    loop: start=0, step=1, limit=4
    $region2: #{tpu_custom_call.1} parent=1 // loop_pre_header
      _
    $region3: #{tpu_custom_call.1} parent=1 // loop_header
      %s36 = sphi 0, %s40
      %p37 = scmp.ge.s32.totalorder %s36, 4
      %s46 = sphi 0, %s48
      %s49 = sphi 0, %s46
      %s50 = sphi 0, %s49
      %s66 = sphi 0, %s50
      %s72 = sphi 0, %s74
      %s75 = sphi 0, %s72
      %s76 = sphi 0, %s75
      %s92 = sphi 0, %s76
      %s98 = sphi 0, %s100
      %s101 = sphi 0, %s98
      %s102 = sphi 0, %s101
      %s118 = sphi 0, %s102
      %s122 = sphi 0, %s122
      %s124 = sphi 0, %s122
      %s125 = sphi 0, %s124
      %s139 = sphi 0, %s125
      %s143 = sphi 0, %s143
      %s145 = sphi 0, %s143
      %s146 = sphi 0, %s145
      %s160 = sphi 0, %s146
      %s164 = sphi 0, %s164
      %s166 = sphi 0, %s164
      %s167 = sphi 0, %s166
      %s181 = sphi 0, %s167
      %s185 = sphi 0, %s185
      %s187 = sphi 0, %s185
      %s188 = sphi 0, %s187
      %s202 = sphi 0, %s188
      %s206 = sphi 0, %s206
      %s208 = sphi 0, %s206
      %s209 = sphi 0, %s208
      %s223 = sphi 0, %s209
      %s227 = sphi 0, %s227
      %s229 = sphi 0, %s227
      %s230 = sphi 0, %s229
      %s244 = sphi 0, %s230
      %s248 = sphi 0, %s248
      %s250 = sphi 0, %s248
      %s251 = sphi 0, %s250
      %s265 = sphi 0, %s251
      %s269 = sphi 0, %s269
      %s271 = sphi 0, %s269
      %s272 = sphi 0, %s271
      %s286 = sphi 0, %s272
      %s290 = sphi 0, %s290
      %s292 = sphi 0, %s290
      %s293 = sphi 0, %s292
      %s307 = sphi 0, %s293
      %s311 = sphi 0, %s311
      %s313 = sphi 0, %s311
      %s314 = sphi 0, %s313
      %s328 = sphi 0, %s314
      %s332 = sphi 0, %s332
      %s334 = sphi 0, %s332
      %s335 = sphi 0, %s334
      %s349 = sphi 0, %s335
      %s353 = sphi 0, %s353
      %s355 = sphi 0, %s353
      %s356 = sphi 0, %s355
      %s370 = sphi 0, %s356
      %s374 = sphi 0, %s374
      %s376 = sphi 0, %s374
      %s377 = sphi 0, %s376
      %s391 = sphi 0, %s377
      %s395 = sphi 0, %s395
      %s397 = sphi 0, %s395
      %s398 = sphi 0, %s397
      %s412 = sphi 0, %s398
      %s418 = sphi 0, %s420
      %s421 = sphi 0, %s418
      %s422 = sphi 0, %s421
      %s438 = sphi 0, %s422
    $region4: #{tpu_custom_call.1} parent=1 // loop_header_branch
      %39 = sbr.rel (%p37) target = $region8
    $region5: #{tpu_custom_call.1} parent=1 // loop_body
      %s41 = ssub.s32 %s36, 1
      %s42 = ssub.s32 %s36, 2
      %s43 = sadd.s32 %s36, 1
      %s44 = ssub.s32 %s36, %s43
      %p45 = scmp.eq.s32.totalorder %s44, 0
      %s47 = sadd.s32 %s46, 1
      %s48 = scalar_select %p45, %s46, %s47
      %p51 = pneg %p45
      %p52 = scmp.eq.s32.totalorder %s36, 1
      %p53 = por %p51, %p52
      %p54 = scmp.ne.s32.totalorder %s46, %s49
      %p55 = scmp.eq.s32.totalorder %s36, 0
      %p56 = por %p54, %p55
      %p57 = scmp.ne.s32.totalorder %s46, %s49
      %p58 = scmp.eq.s32.totalorder %s41, 1
      %p59 = por %p57, %p58
      %p60 = scmp.ne.s32.totalorder %s49, %s50
      %p61 = scmp.eq.s32.totalorder %s41, 0
      %p62 = por %p60, %p61
      %p63 = scmp.ne.s32.totalorder %s49, %s50
      %p64 = scmp.eq.s32.totalorder %s42, 1
      %p65 = por %p63, %p64
      %p67 = scmp.ne.s32.totalorder %s50, %s66
      %p68 = scmp.eq.s32.totalorder %s42, 0
      %p69 = por %p67, %p68
      %s70 = ssub.s32 %s36, %s43
      %p71 = scmp.eq.s32.totalorder %s70, 0
      %s73 = sadd.s32 %s72, 1
      %s74 = scalar_select %p71, %s72, %s73
      %p77 = pneg %p71
      %p78 = scmp.eq.s32.totalorder %s36, 1
      %p79 = por %p77, %p78
      %p80 = scmp.ne.s32.totalorder %s72, %s75
      %p81 = scmp.eq.s32.totalorder %s36, 0
      %p82 = por %p80, %p81
      %p83 = scmp.ne.s32.totalorder %s72, %s75
      %p84 = scmp.eq.s32.totalorder %s41, 1
      %p85 = por %p83, %p84
      %p86 = scmp.ne.s32.totalorder %s75, %s76
      %p87 = scmp.eq.s32.totalorder %s41, 0
      %p88 = por %p86, %p87
      %p89 = scmp.ne.s32.totalorder %s75, %s76
      %p90 = scmp.eq.s32.totalorder %s42, 1
      %p91 = por %p89, %p90
      %p93 = scmp.ne.s32.totalorder %s76, %s92
      %p94 = scmp.eq.s32.totalorder %s42, 0
      %p95 = por %p93, %p94
      %s96 = ssub.s32 %s36, %s43
      %p97 = scmp.eq.s32.totalorder %s96, 0
      %s99 = sadd.s32 %s98, 1
      %s100 = scalar_select %p97, %s98, %s99
      %p103 = pneg %p97
      %p104 = scmp.eq.s32.totalorder %s36, 1
      %p105 = por %p103, %p104
      %p106 = scmp.ne.s32.totalorder %s98, %s101
      %p107 = scmp.eq.s32.totalorder %s36, 0
      %p108 = por %p106, %p107
      %p109 = scmp.ne.s32.totalorder %s98, %s101
      %p110 = scmp.eq.s32.totalorder %s41, 1
      %p111 = por %p109, %p110
      %p112 = scmp.ne.s32.totalorder %s101, %s102
      %p113 = scmp.eq.s32.totalorder %s41, 0
      %p114 = por %p112, %p113
      %p115 = scmp.ne.s32.totalorder %s101, %s102
      %p116 = scmp.eq.s32.totalorder %s42, 1
      %p117 = por %p115, %p116
      %p119 = scmp.ne.s32.totalorder %s102, %s118
      %p120 = scmp.eq.s32.totalorder %s42, 0
      %p121 = por %p119, %p120
      %s123 = sadd.s32 %s122, 1
      %p126 = scmp.eq.s32.totalorder %s36, 1
      %p127 = scmp.ne.s32.totalorder %s122, %s124
      %p128 = scmp.eq.s32.totalorder %s36, 0
      %p129 = por %p127, %p128
      %p130 = scmp.ne.s32.totalorder %s122, %s124
      %p131 = scmp.eq.s32.totalorder %s41, 1
      %p132 = por %p130, %p131
      %p133 = scmp.ne.s32.totalorder %s124, %s125
      %p134 = scmp.eq.s32.totalorder %s41, 0
      %p135 = por %p133, %p134
      %p136 = scmp.ne.s32.totalorder %s124, %s125
      %p137 = scmp.eq.s32.totalorder %s42, 1
      %p138 = por %p136, %p137
      %p140 = scmp.ne.s32.totalorder %s125, %s139
      %p141 = scmp.eq.s32.totalorder %s42, 0
      %p142 = por %p140, %p141
      %s144 = sadd.s32 %s143, 1
      %p147 = scmp.eq.s32.totalorder %s36, 1
      %p148 = scmp.ne.s32.totalorder %s143, %s145
      %p149 = scmp.eq.s32.totalorder %s36, 0
      %p150 = por %p148, %p149
      %p151 = scmp.ne.s32.totalorder %s143, %s145
      %p152 = scmp.eq.s32.totalorder %s41, 1
      %p153 = por %p151, %p152
      %p154 = scmp.ne.s32.totalorder %s145, %s146
      %p155 = scmp.eq.s32.totalorder %s41, 0
      %p156 = por %p154, %p155
      %p157 = scmp.ne.s32.totalorder %s145, %s146
      %p158 = scmp.eq.s32.totalorder %s42, 1
      %p159 = por %p157, %p158
      %p161 = scmp.ne.s32.totalorder %s146, %s160
      %p162 = scmp.eq.s32.totalorder %s42, 0
      %p163 = por %p161, %p162
      %s165 = sadd.s32 %s164, 1
      %p168 = scmp.eq.s32.totalorder %s36, 1
      %p169 = scmp.ne.s32.totalorder %s164, %s166
      %p170 = scmp.eq.s32.totalorder %s36, 0
      %p171 = por %p169, %p170
      %p172 = scmp.ne.s32.totalorder %s164, %s166
      %p173 = scmp.eq.s32.totalorder %s41, 1
      %p174 = por %p172, %p173
      %p175 = scmp.ne.s32.totalorder %s166, %s167
      %p176 = scmp.eq.s32.totalorder %s41, 0
      %p177 = por %p175, %p176
      %p178 = scmp.ne.s32.totalorder %s166, %s167
      %p179 = scmp.eq.s32.totalorder %s42, 1
      %p180 = por %p178, %p179
      %p182 = scmp.ne.s32.totalorder %s167, %s181
      %p183 = scmp.eq.s32.totalorder %s42, 0
      %p184 = por %p182, %p183
      %s186 = sadd.s32 %s185, 1
      %p189 = scmp.eq.s32.totalorder %s36, 1
      %p190 = scmp.ne.s32.totalorder %s185, %s187
      %p191 = scmp.eq.s32.totalorder %s36, 0
      %p192 = por %p190, %p191
      %p193 = scmp.ne.s32.totalorder %s185, %s187
      %p194 = scmp.eq.s32.totalorder %s41, 1
      %p195 = por %p193, %p194
      %p196 = scmp.ne.s32.totalorder %s187, %s188
      %p197 = scmp.eq.s32.totalorder %s41, 0
      %p198 = por %p196, %p197
      %p199 = scmp.ne.s32.totalorder %s187, %s188
      %p200 = scmp.eq.s32.totalorder %s42, 1
      %p201 = por %p199, %p200
      %p203 = scmp.ne.s32.totalorder %s188, %s202
      %p204 = scmp.eq.s32.totalorder %s42, 0
      %p205 = por %p203, %p204
      %s207 = sadd.s32 %s206, 1
      %p210 = scmp.eq.s32.totalorder %s36, 1
      %p211 = scmp.ne.s32.totalorder %s206, %s208
      %p212 = scmp.eq.s32.totalorder %s36, 0
      %p213 = por %p211, %p212
      %p214 = scmp.ne.s32.totalorder %s206, %s208
      %p215 = scmp.eq.s32.totalorder %s41, 1
      %p216 = por %p214, %p215
      %p217 = scmp.ne.s32.totalorder %s208, %s209
      %p218 = scmp.eq.s32.totalorder %s41, 0
      %p219 = por %p217, %p218
      %p220 = scmp.ne.s32.totalorder %s208, %s209
      %p221 = scmp.eq.s32.totalorder %s42, 1
      %p222 = por %p220, %p221
      %p224 = scmp.ne.s32.totalorder %s209, %s223
      %p225 = scmp.eq.s32.totalorder %s42, 0
      %p226 = por %p224, %p225
      %s228 = sadd.s32 %s227, 1
      %p231 = scmp.eq.s32.totalorder %s36, 1
      %p232 = scmp.ne.s32.totalorder %s227, %s229
      %p233 = scmp.eq.s32.totalorder %s36, 0
      %p234 = por %p232, %p233
      %p235 = scmp.ne.s32.totalorder %s227, %s229
      %p236 = scmp.eq.s32.totalorder %s41, 1
      %p237 = por %p235, %p236
      %p238 = scmp.ne.s32.totalorder %s229, %s230
      %p239 = scmp.eq.s32.totalorder %s41, 0
      %p240 = por %p238, %p239
      %p241 = scmp.ne.s32.totalorder %s229, %s230
      %p242 = scmp.eq.s32.totalorder %s42, 1
      %p243 = por %p241, %p242
      %p245 = scmp.ne.s32.totalorder %s230, %s244
      %p246 = scmp.eq.s32.totalorder %s42, 0
      %p247 = por %p245, %p246
      %s249 = sadd.s32 %s248, 1
      %p252 = scmp.eq.s32.totalorder %s36, 1
      %p253 = scmp.ne.s32.totalorder %s248, %s250
      %p254 = scmp.eq.s32.totalorder %s36, 0
      %p255 = por %p253, %p254
      %p256 = scmp.ne.s32.totalorder %s248, %s250
      %p257 = scmp.eq.s32.totalorder %s41, 1
      %p258 = por %p256, %p257
      %p259 = scmp.ne.s32.totalorder %s250, %s251
      %p260 = scmp.eq.s32.totalorder %s41, 0
      %p261 = por %p259, %p260
      %p262 = scmp.ne.s32.totalorder %s250, %s251
      %p263 = scmp.eq.s32.totalorder %s42, 1
      %p264 = por %p262, %p263
      %p266 = scmp.ne.s32.totalorder %s251, %s265
      %p267 = scmp.eq.s32.totalorder %s42, 0
      %p268 = por %p266, %p267
      %s270 = sadd.s32 %s269, 1
      %p273 = scmp.eq.s32.totalorder %s36, 1
      %p274 = scmp.ne.s32.totalorder %s269, %s271
      %p275 = scmp.eq.s32.totalorder %s36, 0
      %p276 = por %p274, %p275
      %p277 = scmp.ne.s32.totalorder %s269, %s271
      %p278 = scmp.eq.s32.totalorder %s41, 1
      %p279 = por %p277, %p278
      %p280 = scmp.ne.s32.totalorder %s271, %s272
      %p281 = scmp.eq.s32.totalorder %s41, 0
      %p282 = por %p280, %p281
      %p283 = scmp.ne.s32.totalorder %s271, %s272
      %p284 = scmp.eq.s32.totalorder %s42, 1
      %p285 = por %p283, %p284
      %p287 = scmp.ne.s32.totalorder %s272, %s286
      %p288 = scmp.eq.s32.totalorder %s42, 0
      %p289 = por %p287, %p288
      %s291 = sadd.s32 %s290, 1
      %p294 = scmp.eq.s32.totalorder %s36, 1
      %p295 = scmp.ne.s32.totalorder %s290, %s292
      %p296 = scmp.eq.s32.totalorder %s36, 0
      %p297 = por %p295, %p296
      %p298 = scmp.ne.s32.totalorder %s290, %s292
      %p299 = scmp.eq.s32.totalorder %s41, 1
      %p300 = por %p298, %p299
      %p301 = scmp.ne.s32.totalorder %s292, %s293
      %p302 = scmp.eq.s32.totalorder %s41, 0
      %p303 = por %p301, %p302
      %p304 = scmp.ne.s32.totalorder %s292, %s293
      %p305 = scmp.eq.s32.totalorder %s42, 1
      %p306 = por %p304, %p305
      %p308 = scmp.ne.s32.totalorder %s293, %s307
      %p309 = scmp.eq.s32.totalorder %s42, 0
      %p310 = por %p308, %p309
      %s312 = sadd.s32 %s311, 1
      %p315 = scmp.eq.s32.totalorder %s36, 1
      %p316 = scmp.ne.s32.totalorder %s311, %s313
      %p317 = scmp.eq.s32.totalorder %s36, 0
      %p318 = por %p316, %p317
      %p319 = scmp.ne.s32.totalorder %s311, %s313
      %p320 = scmp.eq.s32.totalorder %s41, 1
      %p321 = por %p319, %p320
      %p322 = scmp.ne.s32.totalorder %s313, %s314
      %p323 = scmp.eq.s32.totalorder %s41, 0
      %p324 = por %p322, %p323
      %p325 = scmp.ne.s32.totalorder %s313, %s314
      %p326 = scmp.eq.s32.totalorder %s42, 1
      %p327 = por %p325, %p326
      %p329 = scmp.ne.s32.totalorder %s314, %s328
      %p330 = scmp.eq.s32.totalorder %s42, 0
      %p331 = por %p329, %p330
      %s333 = sadd.s32 %s332, 1
      %p336 = scmp.eq.s32.totalorder %s36, 1
      %p337 = scmp.ne.s32.totalorder %s332, %s334
      %p338 = scmp.eq.s32.totalorder %s36, 0
      %p339 = por %p337, %p338
      %p340 = scmp.ne.s32.totalorder %s332, %s334
      %p341 = scmp.eq.s32.totalorder %s41, 1
      %p342 = por %p340, %p341
      %p343 = scmp.ne.s32.totalorder %s334, %s335
      %p344 = scmp.eq.s32.totalorder %s41, 0
      %p345 = por %p343, %p344
      %p346 = scmp.ne.s32.totalorder %s334, %s335
      %p347 = scmp.eq.s32.totalorder %s42, 1
      %p348 = por %p346, %p347
      %p350 = scmp.ne.s32.totalorder %s335, %s349
      %p351 = scmp.eq.s32.totalorder %s42, 0
      %p352 = por %p350, %p351
      %s354 = sadd.s32 %s353, 1
      %p357 = scmp.eq.s32.totalorder %s36, 1
      %p358 = scmp.ne.s32.totalorder %s353, %s355
      %p359 = scmp.eq.s32.totalorder %s36, 0
      %p360 = por %p358, %p359
      %p361 = scmp.ne.s32.totalorder %s353, %s355
      %p362 = scmp.eq.s32.totalorder %s41, 1
      %p363 = por %p361, %p362
      %p364 = scmp.ne.s32.totalorder %s355, %s356
      %p365 = scmp.eq.s32.totalorder %s41, 0
      %p366 = por %p364, %p365
      %p367 = scmp.ne.s32.totalorder %s355, %s356
      %p368 = scmp.eq.s32.totalorder %s42, 1
      %p369 = por %p367, %p368
      %p371 = scmp.ne.s32.totalorder %s356, %s370
      %p372 = scmp.eq.s32.totalorder %s42, 0
      %p373 = por %p371, %p372
      %s375 = sadd.s32 %s374, 1
      %p378 = scmp.eq.s32.totalorder %s36, 1
      %p379 = scmp.ne.s32.totalorder %s374, %s376
      %p380 = scmp.eq.s32.totalorder %s36, 0
      %p381 = por %p379, %p380
      %p382 = scmp.ne.s32.totalorder %s374, %s376
      %p383 = scmp.eq.s32.totalorder %s41, 1
      %p384 = por %p382, %p383
      %p385 = scmp.ne.s32.totalorder %s376, %s377
      %p386 = scmp.eq.s32.totalorder %s41, 0
      %p387 = por %p385, %p386
      %p388 = scmp.ne.s32.totalorder %s376, %s377
      %p389 = scmp.eq.s32.totalorder %s42, 1
      %p390 = por %p388, %p389
      %p392 = scmp.ne.s32.totalorder %s377, %s391
      %p393 = scmp.eq.s32.totalorder %s42, 0
      %p394 = por %p392, %p393
      %s396 = sadd.s32 %s395, 1
      %p399 = scmp.eq.s32.totalorder %s36, 1
      %p400 = scmp.ne.s32.totalorder %s395, %s397
      %p401 = scmp.eq.s32.totalorder %s36, 0
      %p402 = por %p400, %p401
      %p403 = scmp.ne.s32.totalorder %s395, %s397
      %p404 = scmp.eq.s32.totalorder %s41, 1
      %p405 = por %p403, %p404
      %p406 = scmp.ne.s32.totalorder %s397, %s398
      %p407 = scmp.eq.s32.totalorder %s41, 0
      %p408 = por %p406, %p407
      %p409 = scmp.ne.s32.totalorder %s397, %s398
      %p410 = scmp.eq.s32.totalorder %s42, 1
      %p411 = por %p409, %p410
      %p413 = scmp.ne.s32.totalorder %s398, %s412
      %p414 = scmp.eq.s32.totalorder %s42, 0
      %p415 = por %p413, %p414
      %s416 = ssub.s32 %s36, %s43
      %p417 = scmp.eq.s32.totalorder %s416, 0
      %s419 = sadd.s32 %s418, 1
      %s420 = scalar_select %p417, %s418, %s419
      %p423 = pneg %p417
      %p424 = scmp.eq.s32.totalorder %s36, 1
      %p425 = por %p423, %p424
      %p426 = scmp.ne.s32.totalorder %s418, %s421
      %p427 = scmp.eq.s32.totalorder %s36, 0
      %p428 = por %p426, %p427
      %p429 = scmp.ne.s32.totalorder %s418, %s421
      %p430 = scmp.eq.s32.totalorder %s41, 1
      %p431 = por %p429, %p430
      %p432 = scmp.ne.s32.totalorder %s421, %s422
      %p433 = scmp.eq.s32.totalorder %s41, 0
      %p434 = por %p432, %p433
      %p435 = scmp.ne.s32.totalorder %s421, %s422
      %p436 = scmp.eq.s32.totalorder %s42, 1
      %p437 = por %p435, %p436
      %p439 = scmp.ne.s32.totalorder %s422, %s438
      %p440 = scmp.eq.s32.totalorder %s42, 0
      %p441 = por %p439, %p440
      %p442 = scmp.le.s32.totalorder 1, %s36
      %p443 = scmp.lt.s32.totalorder %s36, 3
      %p444 = pnand %p442, %p443
      %p445 = pneg %p444
      // Predicated region
      $region9: #{tpu_custom_call.1} parent=5 // pred_check
        _
      $region10: #{tpu_custom_call.1} parent=5 // pred_check_branch
        %447 = sbr.rel (%p444) target = $region12
      $region11: #{tpu_custom_call.1} parent=5 // pred_region
        %s448 = ssub.s32 %s36, 1
        // Predicated region
        $region13: #{tpu_custom_call.1} parent=11 // pred_check
          %p449 = pneg %p135
        $region14: #{tpu_custom_call.1} parent=11 // pred_check_branch
          %451 = sbr.rel (%p449) target = $region16
        $region15: #{tpu_custom_call.1} parent=11 // pred_region
          %s453 = ssub.s32 512, 512
          %454 = vsyncadd [#allocation9], %s453
          %s455 = sshll.u32 [#allocation8], 4
          %s456 = int_to_ptr.vmem [resolvable:$true] %s455
          %461 = dma.hbm_to_vmem [thread:$0]  %s3, 512, %s456, [#allocation9], 128, 128, 8
        $region16: #{tpu_custom_call.1} parent=11 // pred_fallthru
          _
        // Predicated region
        $region17: #{tpu_custom_call.1} parent=11 // pred_check
          %p462 = pneg %p156
        $region18: #{tpu_custom_call.1} parent=11 // pred_check_branch
          %464 = sbr.rel (%p462) target = $region20
        $region19: #{tpu_custom_call.1} parent=11 // pred_region
          %s466 = ssub.s32 512, 512
          %467 = vsyncadd [#allocation9], %s466
          %s468 = sshll.u32 [#allocation10], 4
          %s469 = int_to_ptr.vmem [resolvable:$true] %s468
          %474 = dma.hbm_to_vmem [thread:$0]  %s4, 512, %s469, [#allocation9], 128, 128, 8
        $region20: #{tpu_custom_call.1} parent=11 // pred_fallthru
          _
        // Predicated region
        $region21: #{tpu_custom_call.1} parent=11 // pred_check
          %p475 = pneg %p177
        $region22: #{tpu_custom_call.1} parent=11 // pred_check_branch
          %477 = sbr.rel (%p475) target = $region24
        $region23: #{tpu_custom_call.1} parent=11 // pred_region
          %s479 = ssub.s32 512, 512
          %480 = vsyncadd [#allocation12], %s479
          %s481 = sshll.u32 [#allocation11], 4
          %s482 = int_to_ptr.vmem [resolvable:$true] %s481
          %487 = dma.hbm_to_vmem [thread:$0]  %s5, 512, %s482, [#allocation12], 128, 128, 8
        $region24: #{tpu_custom_call.1} parent=11 // pred_fallthru
          _
        // Predicated region
        $region25: #{tpu_custom_call.1} parent=11 // pred_check
          %p488 = pneg %p198
        $region26: #{tpu_custom_call.1} parent=11 // pred_check_branch
          %490 = sbr.rel (%p488) target = $region28
        $region27: #{tpu_custom_call.1} parent=11 // pred_region
          %s492 = ssub.s32 512, 512
          %493 = vsyncadd [#allocation12], %s492
          %s494 = sshll.u32 [#allocation13], 4
          %s495 = int_to_ptr.vmem [resolvable:$true] %s494
          %500 = dma.hbm_to_vmem [thread:$0]  %s6, 512, %s495, [#allocation12], 128, 128, 8
        $region28: #{tpu_custom_call.1} parent=11 // pred_fallthru
          _
        // Predicated region
        $region29: #{tpu_custom_call.1} parent=11 // pred_check
          %p501 = pneg %p219
        $region30: #{tpu_custom_call.1} parent=11 // pred_check_branch
          %503 = sbr.rel (%p501) target = $region32
        $region31: #{tpu_custom_call.1} parent=11 // pred_region
          _
        $region32: #{tpu_custom_call.1} parent=11 // pred_fallthru
          _
        // Predicated region
        $region33: #{tpu_custom_call.1} parent=11 // pred_check
          %p504 = pneg %p240
        $region34: #{tpu_custom_call.1} parent=11 // pred_check_branch
          %506 = sbr.rel (%p504) target = $region36
        $region35: #{tpu_custom_call.1} parent=11 // pred_region
          %s508 = ssub.s32 16, 16
          %509 = vsyncadd [#allocation15], %s508
          %s511 = sshll.u32 [#allocation14], 4
          %s512 = int_to_ptr.vmem [resolvable:$true] %s511
          %514 = dma.hbm_to_vmem [thread:$0]  %s8, 16, %s512, [#allocation15]
        $region36: #{tpu_custom_call.1} parent=11 // pred_fallthru
          _
        // Predicated region
        $region37: #{tpu_custom_call.1} parent=11 // pred_check
          %p515 = pneg %p261
        $region38: #{tpu_custom_call.1} parent=11 // pred_check_branch
          %517 = sbr.rel (%p515) target = $region40
        $region39: #{tpu_custom_call.1} parent=11 // pred_region
          %s519 = ssub.s32 16, 16
          %520 = vsyncadd [#allocation15], %s519
          %s522 = sshll.u32 [#allocation16], 4
          %s523 = int_to_ptr.vmem [resolvable:$true] %s522
          %525 = dma.hbm_to_vmem [thread:$0]  %s9, 16, %s523, [#allocation15]
        $region40: #{tpu_custom_call.1} parent=11 // pred_fallthru
          _
        // Predicated region
        $region41: #{tpu_custom_call.1} parent=11 // pred_check
          %p526 = pneg %p282
        $region42: #{tpu_custom_call.1} parent=11 // pred_check_branch
          %528 = sbr.rel (%p526) target = $region44
        $region43: #{tpu_custom_call.1} parent=11 // pred_region
          %s530 = ssub.s32 16, 16
          %531 = vsyncadd [#allocation18], %s530
          %s533 = sshll.u32 [#allocation17], 4
          %s534 = int_to_ptr.vmem [resolvable:$true] %s533
          %536 = dma.hbm_to_vmem [thread:$0]  %s10, 16, %s534, [#allocation18]
        $region44: #{tpu_custom_call.1} parent=11 // pred_fallthru
          _
        // Predicated region
        $region45: #{tpu_custom_call.1} parent=11 // pred_check
          %p537 = pneg %p303
        $region46: #{tpu_custom_call.1} parent=11 // pred_check_branch
          %539 = sbr.rel (%p537) target = $region48
        $region47: #{tpu_custom_call.1} parent=11 // pred_region
          _
        $region48: #{tpu_custom_call.1} parent=11 // pred_fallthru
          _
        // Predicated region
        $region49: #{tpu_custom_call.1} parent=11 // pred_check
          %p540 = pneg %p324
        $region50: #{tpu_custom_call.1} parent=11 // pred_check_branch
          %542 = sbr.rel (%p540) target = $region52
        $region51: #{tpu_custom_call.1} parent=11 // pred_region
          _
        $region52: #{tpu_custom_call.1} parent=11 // pred_fallthru
          _
        // Predicated region
        $region53: #{tpu_custom_call.1} parent=11 // pred_check
          %p543 = pneg %p345
        $region54: #{tpu_custom_call.1} parent=11 // pred_check_branch
          %545 = sbr.rel (%p543) target = $region56
        $region55: #{tpu_custom_call.1} parent=11 // pred_region
          _
        $region56: #{tpu_custom_call.1} parent=11 // pred_fallthru
          _
        // Predicated region
        $region57: #{tpu_custom_call.1} parent=11 // pred_check
          %p546 = pneg %p366
        $region58: #{tpu_custom_call.1} parent=11 // pred_check_branch
          %548 = sbr.rel (%p546) target = $region60
        $region59: #{tpu_custom_call.1} parent=11 // pred_region
          _
        $region60: #{tpu_custom_call.1} parent=11 // pred_fallthru
          _
        // Predicated region
        $region61: #{tpu_custom_call.1} parent=11 // pred_check
          %p549 = pneg %p387
        $region62: #{tpu_custom_call.1} parent=11 // pred_check_branch
          %551 = sbr.rel (%p549) target = $region64
        $region63: #{tpu_custom_call.1} parent=11 // pred_region
          _
        $region64: #{tpu_custom_call.1} parent=11 // pred_fallthru
          _
        // Predicated region
        $region65: #{tpu_custom_call.1} parent=11 // pred_check
          %p552 = pneg %p408
        $region66: #{tpu_custom_call.1} parent=11 // pred_check_branch
          %554 = sbr.rel (%p552) target = $region68
        $region67: #{tpu_custom_call.1} parent=11 // pred_region
          _
        $region68: #{tpu_custom_call.1} parent=11 // pred_fallthru
          _
      $region12: #{tpu_custom_call.1} parent=5 // pred_fallthru
        _
      %p555 = scmp.lt.s32.totalorder %s36, 2
      // Predicated region
      $region69: #{tpu_custom_call.1} parent=5 // pred_check
        %p556 = pneg %p555
      $region70: #{tpu_custom_call.1} parent=5 // pred_check_branch
        %558 = sbr.rel (%p556) target = $region72
      $region71: #{tpu_custom_call.1} parent=5 // pred_region
        // Predicated region
        $region73: #{tpu_custom_call.1} parent=71 // pred_check
          %p559 = pneg %p56
        $region74: #{tpu_custom_call.1} parent=71 // pred_check_branch
          %561 = sbr.rel (%p559) target = $region76
        $region75: #{tpu_custom_call.1} parent=71 // pred_region
          %s562 = sand.u32 %s46, 1
          %s563 = scalar_lea.sflag [#allocation3], %s562
          %s564 = sand.u32 %s46, 1
          %s565 = smul.addr %s564, 8
          %s566 = scalar_lea.vmem [#allocation2], %s565
          %s568 = ssub.s32 128, 128
          %569 = vsyncadd %s563, %s568
          %s570 = smul.addr %s36, 128
          %s571 = scalar_lea.hbm %s0, %s570
          %s573 = sshll.u32 %s566, 4
          %s574 = int_to_ptr.vmem [resolvable:$true] %s573
          %576 = dma.hbm_to_vmem [thread:$0]  %s571, 128, %s574, %s563
        $region76: #{tpu_custom_call.1} parent=71 // pred_fallthru
          _
        // Predicated region
        $region77: #{tpu_custom_call.1} parent=71 // pred_check
          %p577 = pneg %p82
        $region78: #{tpu_custom_call.1} parent=71 // pred_check_branch
          %579 = sbr.rel (%p577) target = $region80
        $region79: #{tpu_custom_call.1} parent=71 // pred_region
          %s580 = sand.u32 %s36, 1
          %s581 = scalar_lea.sflag [#allocation6], %s580
          %s582 = sand.u32 %s72, 1
          %s583 = smul.addr %s582, 8
          %s584 = scalar_lea.vmem [#allocation5], %s583
          %s586 = ssub.s32 128, 128
          %587 = vsyncadd %s581, %s586
          %s588 = smul.addr %s36, 128
          %s589 = scalar_lea.hbm %s1, %s588
          %s591 = sshll.u32 %s584, 4
          %s592 = int_to_ptr.vmem [resolvable:$true] %s591
          %594 = dma.hbm_to_vmem [thread:$0]  %s589, 128, %s592, %s581
        $region80: #{tpu_custom_call.1} parent=71 // pred_fallthru
          _
        // Predicated region
        $region81: #{tpu_custom_call.1} parent=71 // pred_check
          %p595 = pneg %p108
        $region82: #{tpu_custom_call.1} parent=71 // pred_check_branch
          %597 = sbr.rel (%p595) target = $region84
        $region83: #{tpu_custom_call.1} parent=71 // pred_region
          %s598 = sand.u32 %s36, 1
          %s599 = scalar_lea.sflag [#allocation6], %s598
          %s600 = sand.u32 %s98, 1
          %s601 = smul.addr %s600, 8
          %s602 = scalar_lea.vmem [#allocation7], %s601
          %s604 = ssub.s32 128, 128
          %605 = vsyncadd %s599, %s604
          %s606 = smul.addr %s36, 128
          %s607 = scalar_lea.hbm %s2, %s606
          %s609 = sshll.u32 %s602, 4
          %s610 = int_to_ptr.vmem [resolvable:$true] %s609
          %612 = dma.hbm_to_vmem [thread:$0]  %s607, 128, %s610, %s599
        $region84: #{tpu_custom_call.1} parent=71 // pred_fallthru
          _
      $region72: #{tpu_custom_call.1} parent=5 // pred_fallthru
        _
      %p613 = scmp.le.s32.totalorder 1, %s36
      %p614 = scmp.lt.s32.totalorder %s36, 3
      %p615 = pnand %p613, %p614
      %p616 = pneg %p615
      // Predicated region
      $region85: #{tpu_custom_call.1} parent=5 // pred_check
        _
      $region86: #{tpu_custom_call.1} parent=5 // pred_check_branch
        %618 = sbr.rel (%p615) target = $region88
      $region87: #{tpu_custom_call.1} parent=5 // pred_region
        %s619 = ssub.s32 %s36, 1
        %s620 = sand.u32 %s49, 1
        %s621 = scalar_lea.sflag [#allocation3], %s620
        %s622 = sand.u32 %s49, 1
        %s623 = smul.addr %s622, 8
        %s624 = scalar_lea.vmem [#allocation2], %s623
        // Predicated region
        $region89: #{tpu_custom_call.1} parent=87 // pred_check
          %p625 = pneg %p62
        $region90: #{tpu_custom_call.1} parent=87 // pred_check_branch
          %627 = sbr.rel (%p625) target = $region92
        $region91: #{tpu_custom_call.1} parent=87 // pred_region
          %628 = dma.done %s621, 128
        $region92: #{tpu_custom_call.1} parent=87 // pred_fallthru
          _
        %s629 = sand.u32 %s41, 1
        %s630 = scalar_lea.sflag [#allocation6], %s629
        %s631 = sand.u32 %s75, 1
        %s632 = smul.addr %s631, 8
        %s633 = scalar_lea.vmem [#allocation5], %s632
        // Predicated region
        $region93: #{tpu_custom_call.1} parent=87 // pred_check
          %p634 = pneg %p88
        $region94: #{tpu_custom_call.1} parent=87 // pred_check_branch
          %636 = sbr.rel (%p634) target = $region96
        $region95: #{tpu_custom_call.1} parent=87 // pred_region
          %637 = dma.done %s630, 128
        $region96: #{tpu_custom_call.1} parent=87 // pred_fallthru
          _
        %s638 = sand.u32 %s41, 1
        %s639 = scalar_lea.sflag [#allocation6], %s638
        %s640 = sand.u32 %s101, 1
        %s641 = smul.addr %s640, 8
        %s642 = scalar_lea.vmem [#allocation7], %s641
        // Predicated region
        $region97: #{tpu_custom_call.1} parent=87 // pred_check
          %p643 = pneg %p114
        $region98: #{tpu_custom_call.1} parent=87 // pred_check_branch
          %645 = sbr.rel (%p643) target = $region100
        $region99: #{tpu_custom_call.1} parent=87 // pred_region
          %646 = dma.done %s639, 128
        $region100: #{tpu_custom_call.1} parent=87 // pred_fallthru
          _
        // Predicated region
        $region101: #{tpu_custom_call.1} parent=87 // pred_check
          %p647 = pneg %p135
        $region102: #{tpu_custom_call.1} parent=87 // pred_check_branch
          %649 = sbr.rel (%p647) target = $region104
        $region103: #{tpu_custom_call.1} parent=87 // pred_region
          %650 = dma.done [#allocation9], 512
        $region104: #{tpu_custom_call.1} parent=87 // pred_fallthru
          _
        // Predicated region
        $region105: #{tpu_custom_call.1} parent=87 // pred_check
          %p651 = pneg %p156
        $region106: #{tpu_custom_call.1} parent=87 // pred_check_branch
          %653 = sbr.rel (%p651) target = $region108
        $region107: #{tpu_custom_call.1} parent=87 // pred_region
          %654 = dma.done [#allocation9], 512
        $region108: #{tpu_custom_call.1} parent=87 // pred_fallthru
          _
        // Predicated region
        $region109: #{tpu_custom_call.1} parent=87 // pred_check
          %p655 = pneg %p177
        $region110: #{tpu_custom_call.1} parent=87 // pred_check_branch
          %657 = sbr.rel (%p655) target = $region112
        $region111: #{tpu_custom_call.1} parent=87 // pred_region
          %658 = dma.done [#allocation12], 512
        $region112: #{tpu_custom_call.1} parent=87 // pred_fallthru
          _
        // Predicated region
        $region113: #{tpu_custom_call.1} parent=87 // pred_check
          %p659 = pneg %p198
        $region114: #{tpu_custom_call.1} parent=87 // pred_check_branch
          %661 = sbr.rel (%p659) target = $region116
        $region115: #{tpu_custom_call.1} parent=87 // pred_region
          %662 = dma.done [#allocation12], 512
        $region116: #{tpu_custom_call.1} parent=87 // pred_fallthru
          _
        // Predicated region
        $region117: #{tpu_custom_call.1} parent=87 // pred_check
          %p663 = pneg %p240
        $region118: #{tpu_custom_call.1} parent=87 // pred_check_branch
          %665 = sbr.rel (%p663) target = $region120
        $region119: #{tpu_custom_call.1} parent=87 // pred_region
          %666 = dma.done [#allocation15], 16
        $region120: #{tpu_custom_call.1} parent=87 // pred_fallthru
          _
        // Predicated region
        $region121: #{tpu_custom_call.1} parent=87 // pred_check
          %p667 = pneg %p261
        $region122: #{tpu_custom_call.1} parent=87 // pred_check_branch
          %669 = sbr.rel (%p667) target = $region124
        $region123: #{tpu_custom_call.1} parent=87 // pred_region
          %670 = dma.done [#allocation15], 16
        $region124: #{tpu_custom_call.1} parent=87 // pred_fallthru
          _
        // Predicated region
        $region125: #{tpu_custom_call.1} parent=87 // pred_check
          %p671 = pneg %p282
        $region126: #{tpu_custom_call.1} parent=87 // pred_check_branch
          %673 = sbr.rel (%p671) target = $region128
        $region127: #{tpu_custom_call.1} parent=87 // pred_region
          %674 = dma.done [#allocation18], 16
        $region128: #{tpu_custom_call.1} parent=87 // pred_fallthru
          _
        %s675 = sand.u32 %s49, 1
        %s676 = scalar_lea.sflag [#allocation3], %s675
        %s677 = sand.u32 %s49, 1
        %s678 = smul.addr %s677, 8
        %s679 = scalar_lea.vmem [#allocation2], %s678
        %p680 = pneg %p62
        %p681 = pneg %p59
        %s682 = sand.u32 %s41, 1
        %s683 = scalar_lea.sflag [#allocation6], %s682
        %s684 = sand.u32 %s75, 1
        %s685 = smul.addr %s684, 8
        %s686 = scalar_lea.vmem [#allocation5], %s685
        %p687 = pneg %p88
        %p688 = pneg %p85
        %s689 = sand.u32 %s41, 1
        %s690 = scalar_lea.sflag [#allocation6], %s689
        %s691 = sand.u32 %s101, 1
        %s692 = smul.addr %s691, 8
        %s693 = scalar_lea.vmem [#allocation7], %s692
        %p694 = pneg %p114
        %p695 = pneg %p111
        %p696 = pneg %p135
        %p697 = pneg %p132
        %p698 = pneg %p156
        %p699 = pneg %p153
        %p700 = pneg %p177
        %p701 = pneg %p174
        %p702 = pneg %p198
        %p703 = pneg %p195
        %p704 = pneg %p219
        %p705 = pneg %p216
        %p706 = pneg %p240
        %p707 = pneg %p237
        %p708 = pneg %p261
        %p709 = pneg %p258
        %p710 = pneg %p282
        %p711 = pneg %p279
        %p712 = pneg %p303
        %p713 = pneg %p300
        %p714 = pneg %p324
        %p715 = pneg %p321
        %p716 = pneg %p345
        %p717 = pneg %p342
        %p718 = pneg %p366
        %p719 = pneg %p363
        %p720 = pneg %p387
        %p721 = pneg %p384
        %p722 = pneg %p408
        %p723 = pneg %p405
        %p724 = pneg %p434
        %p725 = pneg %p431
        %s726 = sand.u32 %s421, 1
        %s727 = scalar_lea.sflag [#allocation4], %s726
        %s728 = sand.u32 %s421, 1
        %s729 = smul.addr %s728, 8
        %s730 = scalar_lea.vmem [#allocation19], %s729
        %v731 = vld [vmem:[%s624] sm:$0xff]
        %v732 = vld [vmem:[#allocation8] sm:$0xff]
        %v733 = vld [vmem:[#allocation8 + $0x8] sm:$0xff]
        %v734 = vld [vmem:[#allocation8 + $0x10] sm:$0xff]
        %v735 = vld [vmem:[#allocation8 + $0x18] sm:$0xff]
        %v736 = vld [vmem:[%s7] sm:$0x1]
        %v738 = vlaneseq
        %v739 = vshrl.u32 %v738, 7
        %v740 = vsub.s32 0, %v739
        %v741 = vrot.slane %v736, %v740
        %vm743 = vcmask 261120
        %v745 = vsel %vm743, %v731, 0
        %747 = vmatprep.subr.mxu0 0.0
        %748 = vmatpush1.msra.mxu0 %v732
        %749 = vmatprep.subr.mxu0 0.0
        %750 = vmatpush1.msra.mxu0 %v733
        %751 = vmatprep.subr.mxu0 0.0
        %752 = vmatpush1.msra.mxu0 %v734
        %753 = vmatprep.subr.mxu0 0.0
        %754 = vmatpush1.msra.mxu0 %v735
        %755 = vmatprep.subr.mxu0 0.0
        %756 = vmatpush1.msra.mxu0 0.0
        %757 = vmatprep.subr.mxu0 0.0
        %758 = vmatpush1.msra.mxu0 0.0
        %759 = vmatprep.subr.mxu0 0.0
        %760 = vmatpush1.msra.mxu0 0.0
        %761 = vmatprep.subr.mxu0 0.0
        %762 = vmatpush1.msra.mxu0 0.0
        %763 = vmatprep.subr.mxu0 0.0
        %764 = vmatpush1.msra.mxu0 0.0
        %765 = vmatprep.subr.mxu0 0.0
        %766 = vmatpush1.msra.mxu0 0.0
        %767 = vmatprep.subr.mxu0 0.0
        %768 = vmatpush1.msra.mxu0 0.0
        %769 = vmatprep.subr.mxu0 0.0
        %770 = vmatpush1.msra.mxu0 0.0
        %771 = vmatprep.subr.mxu0 0.0
        %772 = vmatpush1.msra.mxu0 0.0
        %773 = vmatprep.subr.mxu0 0.0
        %774 = vmatpush1.msra.mxu0 0.0
        %775 = vmatprep.subr.mxu0 0.0
        %776 = vmatpush1.msra.mxu0 0.0
        %777 = vmatprep.subr.mxu0 0.0
        %778 = vmatpush1.msra.mxu0 0.0
        %779 = vmatprep.subr.mxu0 0.0
        %780 = vmatpush1.msra.mxu0 0.0
        %781 = vmatprep.subr.mxu0 0.0
        %782 = vmatpush1.msra.mxu0 0.0
        %783 = vmatprep.subr.mxu0 0.0
        %784 = vmatpush1.msra.mxu0 0.0
        %785 = vmatprep.subr.mxu0 0.0
        %786 = vmatpush1.msra.mxu0 0.0
        %787 = vmatprep.subr.mxu0 0.0
        %788 = vmatpush1.msra.mxu0 0.0
        %789 = vmatprep.subr.mxu0 0.0
        %790 = vmatpush1.msra.mxu0 0.0
        %791 = vmatprep.subr.mxu0 0.0
        %792 = vmatpush1.msra.mxu0 0.0
        %793 = vmatprep.subr.mxu0 0.0
        %794 = vmatpush1.msra.mxu0 0.0
        %795 = vmatprep.subr.mxu0 0.0
        %796 = vmatpush1.msra.mxu0 0.0
        %797 = vmatprep.subr.mxu0 0.0
        %798 = vmatpush1.msra.mxu0 0.0
        %799 = vmatprep.subr.mxu0 0.0
        %800 = vmatpush1.msra.mxu0 0.0
        %801 = vmatprep.subr.mxu0 0.0
        %802 = vmatpush1.msra.mxu0 0.0
        %803 = vmatprep.subr.mxu0 0.0
        %804 = vmatpush1.msra.mxu0 0.0
        %805 = vmatprep.subr.mxu0 0.0
        %806 = vmatpush1.msra.mxu0 0.0
        %807 = vmatprep.subr.mxu0 0.0
        %808 = vmatpush1.msra.mxu0 0.0
        %809 = vmatprep.subr.mxu0 0.0
        %810 = vmatpush1.msra.mxu0 0.0
        %811 = vmatprep.mubr.f32.mxu0 0.0
        %812 = vmatmul.mubr.f32.gmra.mrb[0].mxu0 %v745
        %v813 = vpop.f32.mrb[0].mxu0
        %v814 = vadd.f32 %v741, %v813
        %v815 = vpop.f32.mrb[0].mxu0
        %816 = vdwg.mxu0
        %v817 = vld [vmem:[%s633] sm:$0xff]
        %v818 = vld [vmem:[#allocation10] sm:$0xff]
        %v819 = vld [vmem:[#allocation10 + $0x8] sm:$0xff]
        %v820 = vld [vmem:[#allocation10 + $0x10] sm:$0xff]
        %v821 = vld [vmem:[#allocation10 + $0x18] sm:$0xff]
        %v822 = vld [vmem:[#allocation14] sm:$0x1]
        %v824 = vlaneseq
        %v825 = vshrl.u32 %v824, 7
        %v826 = vsub.s32 0, %v825
        %v827 = vrot.slane %v822, %v826
        %v830 = vsel %vm743, %v817, 0
        %832 = vmatprep.subr.mxu0 0.0
        %833 = vmatpush1.msra.mxu0 %v818
        %834 = vmatprep.subr.mxu0 0.0
        %835 = vmatpush1.msra.mxu0 %v819
        %836 = vmatprep.subr.mxu0 0.0
        %837 = vmatpush1.msra.mxu0 %v820
        %838 = vmatprep.subr.mxu0 0.0
        %839 = vmatpush1.msra.mxu0 %v821
        %840 = vmatprep.subr.mxu0 0.0
        %841 = vmatpush1.msra.mxu0 0.0
        %842 = vmatprep.subr.mxu0 0.0
        %843 = vmatpush1.msra.mxu0 0.0
        %844 = vmatprep.subr.mxu0 0.0
        %845 = vmatpush1.msra.mxu0 0.0
        %846 = vmatprep.subr.mxu0 0.0
        %847 = vmatpush1.msra.mxu0 0.0
        %848 = vmatprep.subr.mxu0 0.0
        %849 = vmatpush1.msra.mxu0 0.0
        %850 = vmatprep.subr.mxu0 0.0
        %851 = vmatpush1.msra.mxu0 0.0
        %852 = vmatprep.subr.mxu0 0.0
        %853 = vmatpush1.msra.mxu0 0.0
        %854 = vmatprep.subr.mxu0 0.0
        %855 = vmatpush1.msra.mxu0 0.0
        %856 = vmatprep.subr.mxu0 0.0
        %857 = vmatpush1.msra.mxu0 0.0
        %858 = vmatprep.subr.mxu0 0.0
        %859 = vmatpush1.msra.mxu0 0.0
        %860 = vmatprep.subr.mxu0 0.0
        %861 = vmatpush1.msra.mxu0 0.0
        %862 = vmatprep.subr.mxu0 0.0
        %863 = vmatpush1.msra.mxu0 0.0
        %864 = vmatprep.subr.mxu0 0.0
        %865 = vmatpush1.msra.mxu0 0.0
        %866 = vmatprep.subr.mxu0 0.0
        %867 = vmatpush1.msra.mxu0 0.0
        %868 = vmatprep.subr.mxu0 0.0
        %869 = vmatpush1.msra.mxu0 0.0
        %870 = vmatprep.subr.mxu0 0.0
        %871 = vmatpush1.msra.mxu0 0.0
        %872 = vmatprep.subr.mxu0 0.0
        %873 = vmatpush1.msra.mxu0 0.0
        %874 = vmatprep.subr.mxu0 0.0
        %875 = vmatpush1.msra.mxu0 0.0
        %876 = vmatprep.subr.mxu0 0.0
        %877 = vmatpush1.msra.mxu0 0.0
        %878 = vmatprep.subr.mxu0 0.0
        %879 = vmatpush1.msra.mxu0 0.0
        %880 = vmatprep.subr.mxu0 0.0
        %881 = vmatpush1.msra.mxu0 0.0
        %882 = vmatprep.subr.mxu0 0.0
        %883 = vmatpush1.msra.mxu0 0.0
        %884 = vmatprep.subr.mxu0 0.0
        %885 = vmatpush1.msra.mxu0 0.0
        %886 = vmatprep.subr.mxu0 0.0
        %887 = vmatpush1.msra.mxu0 0.0
        %888 = vmatprep.subr.mxu0 0.0
        %889 = vmatpush1.msra.mxu0 0.0
        %890 = vmatprep.subr.mxu0 0.0
        %891 = vmatpush1.msra.mxu0 0.0
        %892 = vmatprep.subr.mxu0 0.0
        %893 = vmatpush1.msra.mxu0 0.0
        %894 = vmatprep.subr.mxu0 0.0
        %895 = vmatpush1.msra.mxu0 0.0
        %896 = vmatprep.mubr.f32.mxu0 0.0
        %897 = vmatmul.mubr.f32.gmra.mrb[0].mxu0 %v830
        %v898 = vpop.f32.mrb[0].mxu0
        %v899 = vadd.f32 %v827, %v898
        %v900 = vpop.f32.mrb[0].mxu0
        %901 = vdwg.mxu0
        %v902 = vld [vmem:[%s642] sm:$0xff]
        %v903 = vld [vmem:[#allocation11] sm:$0xff]
        %v904 = vld [vmem:[#allocation11 + $0x8] sm:$0xff]
        %v905 = vld [vmem:[#allocation11 + $0x10] sm:$0xff]
        %v906 = vld [vmem:[#allocation11 + $0x18] sm:$0xff]
        %v907 = vld [vmem:[#allocation16] sm:$0x1]
        %v909 = vlaneseq
        %v910 = vshrl.u32 %v909, 7
        %v911 = vsub.s32 0, %v910
        %v912 = vrot.slane %v907, %v911
        %v915 = vsel %vm743, %v902, 0
        %917 = vmatprep.subr.mxu0 0.0
        %918 = vmatpush1.msra.mxu0 %v903
        %919 = vmatprep.subr.mxu0 0.0
        %920 = vmatpush1.msra.mxu0 %v904
        %921 = vmatprep.subr.mxu0 0.0
        %922 = vmatpush1.msra.mxu0 %v905
        %923 = vmatprep.subr.mxu0 0.0
        %924 = vmatpush1.msra.mxu0 %v906
        %925 = vmatprep.subr.mxu0 0.0
        %926 = vmatpush1.msra.mxu0 0.0
        %927 = vmatprep.subr.mxu0 0.0
        %928 = vmatpush1.msra.mxu0 0.0
        %929 = vmatprep.subr.mxu0 0.0
        %930 = vmatpush1.msra.mxu0 0.0
        %931 = vmatprep.subr.mxu0 0.0
        %932 = vmatpush1.msra.mxu0 0.0
        %933 = vmatprep.subr.mxu0 0.0
        %934 = vmatpush1.msra.mxu0 0.0
        %935 = vmatprep.subr.mxu0 0.0
        %936 = vmatpush1.msra.mxu0 0.0
        %937 = vmatprep.subr.mxu0 0.0
        %938 = vmatpush1.msra.mxu0 0.0
        %939 = vmatprep.subr.mxu0 0.0
        %940 = vmatpush1.msra.mxu0 0.0
        %941 = vmatprep.subr.mxu0 0.0
        %942 = vmatpush1.msra.mxu0 0.0
        %943 = vmatprep.subr.mxu0 0.0
        %944 = vmatpush1.msra.mxu0 0.0
        %945 = vmatprep.subr.mxu0 0.0
        %946 = vmatpush1.msra.mxu0 0.0
        %947 = vmatprep.subr.mxu0 0.0
        %948 = vmatpush1.msra.mxu0 0.0
        %949 = vmatprep.subr.mxu0 0.0
        %950 = vmatpush1.msra.mxu0 0.0
        %951 = vmatprep.subr.mxu0 0.0
        %952 = vmatpush1.msra.mxu0 0.0
        %953 = vmatprep.subr.mxu0 0.0
        %954 = vmatpush1.msra.mxu0 0.0
        %955 = vmatprep.subr.mxu0 0.0
        %956 = vmatpush1.msra.mxu0 0.0
        %957 = vmatprep.subr.mxu0 0.0
        %958 = vmatpush1.msra.mxu0 0.0
        %959 = vmatprep.subr.mxu0 0.0
        %960 = vmatpush1.msra.mxu0 0.0
        %961 = vmatprep.subr.mxu0 0.0
        %962 = vmatpush1.msra.mxu0 0.0
        %963 = vmatprep.subr.mxu0 0.0
        %964 = vmatpush1.msra.mxu0 0.0
        %965 = vmatprep.subr.mxu0 0.0
        %966 = vmatpush1.msra.mxu0 0.0
        %967 = vmatprep.subr.mxu0 0.0
        %968 = vmatpush1.msra.mxu0 0.0
        %969 = vmatprep.subr.mxu0 0.0
        %970 = vmatpush1.msra.mxu0 0.0
        %971 = vmatprep.subr.mxu0 0.0
        %972 = vmatpush1.msra.mxu0 0.0
        %973 = vmatprep.subr.mxu0 0.0
        %974 = vmatpush1.msra.mxu0 0.0
        %975 = vmatprep.subr.mxu0 0.0
        %976 = vmatpush1.msra.mxu0 0.0
        %977 = vmatprep.subr.mxu0 0.0
        %978 = vmatpush1.msra.mxu0 0.0
        %979 = vmatprep.subr.mxu0 0.0
        %980 = vmatpush1.msra.mxu0 0.0
        %981 = vmatprep.mubr.f32.mxu0 0.0
        %982 = vmatmul.mubr.f32.gmra.mrb[0].mxu0 %v915
        %v983 = vpop.f32.mrb[0].mxu0
        %v984 = vadd.f32 %v912, %v983
        %v985 = vpop.f32.mrb[0].mxu0
        %986 = vdwg.mxu0
        %v987 = vld [vmem:[%s11] sm:$0xff]
        %v988 = vmul.f32 %v814, %v987
        %990 = vrot.lane.b32.xlu0 %v814, 100
        %v991 = vpop.permute.xlu0 %990
        %993 = vrot.lane.b32.xlu0 %v814, 4
        %v994 = vpop.permute.xlu0 %993
        %vm996 = vcmask 31744
        %v997 = vsel %vm996, %v991, %v994
        %v998 = vld [vmem:[%s12] sm:$0xff]
        %v999 = vmul.f32 %v997, %v998
        %v1000 = vadd.f32 %v988, %v999
        %1001 = vrot.lane.b32.xlu0 %v814, 124
        %v1002 = vpop.permute.xlu0 %1001
        %1004 = vrot.lane.b32.xlu0 %v814, 28
        %v1005 = vpop.permute.xlu0 %1004
        %vm1007 = vcmask 228352
        %v1008 = vsel %vm1007, %v1002, %v1005
        %v1009 = vld [vmem:[%s13] sm:$0xff]
        %v1010 = vmul.f32 %v1008, %v1009
        %v1011 = vadd.f32 %v1000, %v1010
        %v1012 = vld [vmem:[%s14] sm:$0xff]
        %v1013 = vmul.f32 %v899, %v1012
        %1015 = vrot.lane.b32.xlu0 %v899, 100
        %v1016 = vpop.permute.xlu0 %1015
        %1018 = vrot.lane.b32.xlu0 %v899, 4
        %v1019 = vpop.permute.xlu0 %1018
        %v1021 = vsel %vm996, %v1016, %v1019
        %v1022 = vld [vmem:[%s15] sm:$0xff]
        %v1023 = vmul.f32 %v1021, %v1022
        %v1024 = vadd.f32 %v1013, %v1023
        %1025 = vrot.lane.b32.xlu0 %v899, 124
        %v1026 = vpop.permute.xlu0 %1025
        %1028 = vrot.lane.b32.xlu0 %v899, 28
        %v1029 = vpop.permute.xlu0 %1028
        %v1031 = vsel %vm1007, %v1026, %v1029
        %v1032 = vld [vmem:[%s16] sm:$0xff]
        %v1033 = vmul.f32 %v1031, %v1032
        %v1034 = vadd.f32 %v1024, %v1033
        %v1035 = vld [vmem:[#allocation13] sm:$0xff]
        %v1036 = vld [vmem:[#allocation13 + $0x8] sm:$0xff]
        %v1037 = vld [vmem:[#allocation13 + $0x10] sm:$0xff]
        %v1038 = vld [vmem:[#allocation13 + $0x18] sm:$0xff]
        %vm1039 = vcmask 64512
        %v1041 = vsel %vm1039, %v1011, 0
        %v1044 = vsel %vm1039, %v1034, 0
        %1046 = vmatprep.subr.mxu0 0.0
        %1047 = vmatpush1.xpose.msra.mxu0 %v1044
        %1048 = vmatprep.subr.mxu0 0.0
        %1049 = vmatpush1.xpose.msra.mxu0 0.0
        %1050 = vmatprep.subr.mxu0 0.0
        %1051 = vmatpush1.xpose.msra.mxu0 0.0
        %1052 = vmatprep.subr.mxu0 0.0
        %1053 = vmatpush1.xpose.msra.mxu0 0.0
        %1054 = vmatprep.subr.mxu0 0.0
        %1055 = vmatpush1.xpose.msra.mxu0 0.0
        %1056 = vmatprep.subr.mxu0 0.0
        %1057 = vmatpush1.xpose.msra.mxu0 0.0
        %1058 = vmatprep.subr.mxu0 0.0
        %1059 = vmatpush1.xpose.msra.mxu0 0.0
        %1060 = vmatprep.subr.mxu0 0.0
        %1061 = vmatpush1.xpose.msra.mxu0 0.0
        %1062 = vmatprep.subr.mxu0 0.0
        %1063 = vmatpush1.xpose.msra.mxu0 0.0
        %1064 = vmatprep.subr.mxu0 0.0
        %1065 = vmatpush1.xpose.msra.mxu0 0.0
        %1066 = vmatprep.subr.mxu0 0.0
        %1067 = vmatpush1.xpose.msra.mxu0 0.0
        %1068 = vmatprep.subr.mxu0 0.0
        %1069 = vmatpush1.xpose.msra.mxu0 0.0
        %1070 = vmatprep.subr.mxu0 0.0
        %1071 = vmatpush1.xpose.msra.mxu0 0.0
        %1072 = vmatprep.subr.mxu0 0.0
        %1073 = vmatpush1.xpose.msra.mxu0 0.0
        %1074 = vmatprep.subr.mxu0 0.0
        %1075 = vmatpush1.xpose.msra.mxu0 0.0
        %1076 = vmatprep.subr.mxu0 0.0
        %1077 = vmatpush1.xpose.msra.mxu0 0.0
        %1078 = vmatprep.subr.mxu0 0.0
        %1079 = vmatpush1.xpose.msra.mxu0 0.0
        %1080 = vmatprep.subr.mxu0 0.0
        %1081 = vmatpush1.xpose.msra.mxu0 0.0
        %1082 = vmatprep.subr.mxu0 0.0
        %1083 = vmatpush1.xpose.msra.mxu0 0.0
        %1084 = vmatprep.subr.mxu0 0.0
        %1085 = vmatpush1.xpose.msra.mxu0 0.0
        %1086 = vmatprep.subr.mxu0 0.0
        %1087 = vmatpush1.xpose.msra.mxu0 0.0
        %1088 = vmatprep.subr.mxu0 0.0
        %1089 = vmatpush1.xpose.msra.mxu0 0.0
        %1090 = vmatprep.subr.mxu0 0.0
        %1091 = vmatpush1.xpose.msra.mxu0 0.0
        %1092 = vmatprep.subr.mxu0 0.0
        %1093 = vmatpush1.xpose.msra.mxu0 0.0
        %1094 = vmatprep.subr.mxu0 0.0
        %1095 = vmatpush1.xpose.msra.mxu0 0.0
        %1096 = vmatprep.subr.mxu0 0.0
        %1097 = vmatpush1.xpose.msra.mxu0 0.0
        %1098 = vmatprep.subr.mxu0 0.0
        %1099 = vmatpush1.xpose.msra.mxu0 0.0
        %1100 = vmatprep.subr.mxu0 0.0
        %1101 = vmatpush1.xpose.msra.mxu0 0.0
        %1102 = vmatprep.subr.mxu0 0.0
        %1103 = vmatpush1.xpose.msra.mxu0 0.0
        %1104 = vmatprep.subr.mxu0 0.0
        %1105 = vmatpush1.xpose.msra.mxu0 0.0
        %1106 = vmatprep.subr.mxu0 0.0
        %1107 = vmatpush1.xpose.msra.mxu0 0.0
        %1108 = vmatprep.subr.mxu0 0.0
        %1109 = vmatpush1.xpose.msra.mxu0 0.0
        %1110 = vmatprep.mubr.f32.mxu0 0.0
        %1111 = vmatmul.mubr.f32.gmra.mrb[0].mxu0 %v1041
        %v1112 = vpop.f32.mrb[0].mxu0
        %v1113 = vadd.f32 0.0, %v1112
        %v1114 = vpop.f32.mrb[0].mxu0
        %1115 = vdwg.mxu0
        %v1116 = vsel %vm1039, %v1113, -inf
        %1117 = vmax.xlane.f32.xlu0 %v1116
        %v1118 = vpop.xlane.xlu0 %1117
        %v1119 = vsub.f32 %v1113, %v1118
        %v1120 = vmul.f32 %v1119, 1.442695
        %v1121 = vpow.pop %v1120
        %v1122 = vsel %vm1039, %v1121, 0.0
        %1123 = vadd.xlane.f32.xlu0 %v1122
        %v1124 = vpop.xlane.xlu0 %1123
        %v1125 = vrcp.pop %v1124
        %v1126 = vmul.f32 %v1121, %v1125
        %v1128 = vsel %vm1039, %v1126, 0
        %1130 = vmatprep.subr.mxu0 0.0
        %1131 = vmatpush1.msra.mxu0 %v984
        %1132 = vmatprep.subr.mxu0 0.0
        %1133 = vmatpush1.msra.mxu0 0.0
        %1134 = vmatprep.subr.mxu0 0.0
        %1135 = vmatpush1.msra.mxu0 0.0
        %1136 = vmatprep.subr.mxu0 0.0
        %1137 = vmatpush1.msra.mxu0 0.0
        %1138 = vmatprep.subr.mxu0 0.0
        %1139 = vmatpush1.msra.mxu0 0.0
        %1140 = vmatprep.subr.mxu0 0.0
        %1141 = vmatpush1.msra.mxu0 0.0
        %1142 = vmatprep.subr.mxu0 0.0
        %1143 = vmatpush1.msra.mxu0 0.0
        %1144 = vmatprep.subr.mxu0 0.0
        %1145 = vmatpush1.msra.mxu0 0.0
        %1146 = vmatprep.subr.mxu0 0.0
        %1147 = vmatpush1.msra.mxu0 0.0
        %1148 = vmatprep.subr.mxu0 0.0
        %1149 = vmatpush1.msra.mxu0 0.0
        %1150 = vmatprep.subr.mxu0 0.0
        %1151 = vmatpush1.msra.mxu0 0.0
        %1152 = vmatprep.subr.mxu0 0.0
        %1153 = vmatpush1.msra.mxu0 0.0
        %1154 = vmatprep.subr.mxu0 0.0
        %1155 = vmatpush1.msra.mxu0 0.0
        %1156 = vmatprep.subr.mxu0 0.0
        %1157 = vmatpush1.msra.mxu0 0.0
        %1158 = vmatprep.subr.mxu0 0.0
        %1159 = vmatpush1.msra.mxu0 0.0
        %1160 = vmatprep.subr.mxu0 0.0
        %1161 = vmatpush1.msra.mxu0 0.0
        %1162 = vmatprep.subr.mxu0 0.0
        %1163 = vmatpush1.msra.mxu0 0.0
        %1164 = vmatprep.subr.mxu0 0.0
        %1165 = vmatpush1.msra.mxu0 0.0
        %1166 = vmatprep.subr.mxu0 0.0
        %1167 = vmatpush1.msra.mxu0 0.0
        %1168 = vmatprep.subr.mxu0 0.0
        %1169 = vmatpush1.msra.mxu0 0.0
        %1170 = vmatprep.subr.mxu0 0.0
        %1171 = vmatpush1.msra.mxu0 0.0
        %1172 = vmatprep.subr.mxu0 0.0
        %1173 = vmatpush1.msra.mxu0 0.0
        %1174 = vmatprep.subr.mxu0 0.0
        %1175 = vmatpush1.msra.mxu0 0.0
        %1176 = vmatprep.subr.mxu0 0.0
        %1177 = vmatpush1.msra.mxu0 0.0
        %1178 = vmatprep.subr.mxu0 0.0
        %1179 = vmatpush1.msra.mxu0 0.0
        %1180 = vmatprep.subr.mxu0 0.0
        %1181 = vmatpush1.msra.mxu0 0.0
        %1182 = vmatprep.subr.mxu0 0.0
        %1183 = vmatpush1.msra.mxu0 0.0
        %1184 = vmatprep.subr.mxu0 0.0
        %1185 = vmatpush1.msra.mxu0 0.0
        %1186 = vmatprep.subr.mxu0 0.0
        %1187 = vmatpush1.msra.mxu0 0.0
        %1188 = vmatprep.subr.mxu0 0.0
        %1189 = vmatpush1.msra.mxu0 0.0
        %1190 = vmatprep.subr.mxu0 0.0
        %1191 = vmatpush1.msra.mxu0 0.0
        %1192 = vmatprep.subr.mxu0 0.0
        %1193 = vmatpush1.msra.mxu0 0.0
        %1194 = vmatprep.mubr.f32.mxu0 0.0
        %1195 = vmatmul.mubr.f32.gmra.mrb[0].mxu0 %v1128
        %v1196 = vpop.f32.mrb[0].mxu0
        %v1197 = vadd.f32 0.0, %v1196
        %v1198 = vpop.f32.mrb[0].mxu0
        %1199 = vdwg.mxu0
        %1200 = vrot.lane.b32.xlu0 %v1011, 120
        %v1201 = vpop.permute.xlu0 %1200
        %1202 = vrot.lane.b32.xlu0 %v1034, 120
        %v1203 = vpop.permute.xlu0 %1202
        %v1204 = vsel %vm1039, %v1201, 0
        %v1206 = vsel %vm1039, %v1203, 0
        %1208 = vmatprep.subr.mxu0 0.0
        %1209 = vmatpush1.xpose.msra.mxu0 %v1206
        %1210 = vmatprep.subr.mxu0 0.0
        %1211 = vmatpush1.xpose.msra.mxu0 0.0
        %1212 = vmatprep.subr.mxu0 0.0
        %1213 = vmatpush1.xpose.msra.mxu0 0.0
        %1214 = vmatprep.subr.mxu0 0.0
        %1215 = vmatpush1.xpose.msra.mxu0 0.0
        %1216 = vmatprep.subr.mxu0 0.0
        %1217 = vmatpush1.xpose.msra.mxu0 0.0
        %1218 = vmatprep.subr.mxu0 0.0
        %1219 = vmatpush1.xpose.msra.mxu0 0.0
        %1220 = vmatprep.subr.mxu0 0.0
        %1221 = vmatpush1.xpose.msra.mxu0 0.0
        %1222 = vmatprep.subr.mxu0 0.0
        %1223 = vmatpush1.xpose.msra.mxu0 0.0
        %1224 = vmatprep.subr.mxu0 0.0
        %1225 = vmatpush1.xpose.msra.mxu0 0.0
        %1226 = vmatprep.subr.mxu0 0.0
        %1227 = vmatpush1.xpose.msra.mxu0 0.0
        %1228 = vmatprep.subr.mxu0 0.0
        %1229 = vmatpush1.xpose.msra.mxu0 0.0
        %1230 = vmatprep.subr.mxu0 0.0
        %1231 = vmatpush1.xpose.msra.mxu0 0.0
        %1232 = vmatprep.subr.mxu0 0.0
        %1233 = vmatpush1.xpose.msra.mxu0 0.0
        %1234 = vmatprep.subr.mxu0 0.0
        %1235 = vmatpush1.xpose.msra.mxu0 0.0
        %1236 = vmatprep.subr.mxu0 0.0
        %1237 = vmatpush1.xpose.msra.mxu0 0.0
        %1238 = vmatprep.subr.mxu0 0.0
        %1239 = vmatpush1.xpose.msra.mxu0 0.0
        %1240 = vmatprep.subr.mxu0 0.0
        %1241 = vmatpush1.xpose.msra.mxu0 0.0
        %1242 = vmatprep.subr.mxu0 0.0
        %1243 = vmatpush1.xpose.msra.mxu0 0.0
        %1244 = vmatprep.subr.mxu0 0.0
        %1245 = vmatpush1.xpose.msra.mxu0 0.0
        %1246 = vmatprep.subr.mxu0 0.0
        %1247 = vmatpush1.xpose.msra.mxu0 0.0
        %1248 = vmatprep.subr.mxu0 0.0
        %1249 = vmatpush1.xpose.msra.mxu0 0.0
        %1250 = vmatprep.subr.mxu0 0.0
        %1251 = vmatpush1.xpose.msra.mxu0 0.0
        %1252 = vmatprep.subr.mxu0 0.0
        %1253 = vmatpush1.xpose.msra.mxu0 0.0
        %1254 = vmatprep.subr.mxu0 0.0
        %1255 = vmatpush1.xpose.msra.mxu0 0.0
        %1256 = vmatprep.subr.mxu0 0.0
        %1257 = vmatpush1.xpose.msra.mxu0 0.0
        %1258 = vmatprep.subr.mxu0 0.0
        %1259 = vmatpush1.xpose.msra.mxu0 0.0
        %1260 = vmatprep.subr.mxu0 0.0
        %1261 = vmatpush1.xpose.msra.mxu0 0.0
        %1262 = vmatprep.subr.mxu0 0.0
        %1263 = vmatpush1.xpose.msra.mxu0 0.0
        %1264 = vmatprep.subr.mxu0 0.0
        %1265 = vmatpush1.xpose.msra.mxu0 0.0
        %1266 = vmatprep.subr.mxu0 0.0
        %1267 = vmatpush1.xpose.msra.mxu0 0.0
        %1268 = vmatprep.subr.mxu0 0.0
        %1269 = vmatpush1.xpose.msra.mxu0 0.0
        %1270 = vmatprep.subr.mxu0 0.0
        %1271 = vmatpush1.xpose.msra.mxu0 0.0
        %1272 = vmatprep.mubr.f32.mxu0 0.0
        %1273 = vmatmul.mubr.f32.gmra.mrb[0].mxu0 %v1204
        %v1274 = vpop.f32.mrb[0].mxu0
        %v1275 = vadd.f32 0.0, %v1274
        %v1276 = vpop.f32.mrb[0].mxu0
        %1277 = vdwg.mxu0
        %v1278 = vsel %vm1039, %v1275, -inf
        %1279 = vmax.xlane.f32.xlu0 %v1278
        %v1280 = vpop.xlane.xlu0 %1279
        %v1281 = vsub.f32 %v1275, %v1280
        %v1282 = vmul.f32 %v1281, 1.442695
        %v1283 = vpow.pop %v1282
        %v1284 = vsel %vm1039, %v1283, 0.0
        %1285 = vadd.xlane.f32.xlu0 %v1284
        %v1286 = vpop.xlane.xlu0 %1285
        %v1287 = vrcp.pop %v1286
        %v1288 = vmul.f32 %v1283, %v1287
        %1290 = vrot.lane.b32.xlu0 %v984, 120
        %v1291 = vpop.permute.xlu0 %1290
        %v1294 = vsel %vm1039, %v1288, 0
        %1296 = vmatprep.subr.mxu0 0.0
        %1297 = vmatpush1.msra.mxu0 %v1291
        %1298 = vmatprep.subr.mxu0 0.0
        %1299 = vmatpush1.msra.mxu0 0.0
        %1300 = vmatprep.subr.mxu0 0.0
        %1301 = vmatpush1.msra.mxu0 0.0
        %1302 = vmatprep.subr.mxu0 0.0
        %1303 = vmatpush1.msra.mxu0 0.0
        %1304 = vmatprep.subr.mxu0 0.0
        %1305 = vmatpush1.msra.mxu0 0.0
        %1306 = vmatprep.subr.mxu0 0.0
        %1307 = vmatpush1.msra.mxu0 0.0
        %1308 = vmatprep.subr.mxu0 0.0
        %1309 = vmatpush1.msra.mxu0 0.0
        %1310 = vmatprep.subr.mxu0 0.0
        %1311 = vmatpush1.msra.mxu0 0.0
        %1312 = vmatprep.subr.mxu0 0.0
        %1313 = vmatpush1.msra.mxu0 0.0
        %1314 = vmatprep.subr.mxu0 0.0
        %1315 = vmatpush1.msra.mxu0 0.0
        %1316 = vmatprep.subr.mxu0 0.0
        %1317 = vmatpush1.msra.mxu0 0.0
        %1318 = vmatprep.subr.mxu0 0.0
        %1319 = vmatpush1.msra.mxu0 0.0
        %1320 = vmatprep.subr.mxu0 0.0
        %1321 = vmatpush1.msra.mxu0 0.0
        %1322 = vmatprep.subr.mxu0 0.0
        %1323 = vmatpush1.msra.mxu0 0.0
        %1324 = vmatprep.subr.mxu0 0.0
        %1325 = vmatpush1.msra.mxu0 0.0
        %1326 = vmatprep.subr.mxu0 0.0
        %1327 = vmatpush1.msra.mxu0 0.0
        %1328 = vmatprep.subr.mxu0 0.0
        %1329 = vmatpush1.msra.mxu0 0.0
        %1330 = vmatprep.subr.mxu0 0.0
        %1331 = vmatpush1.msra.mxu0 0.0
        %1332 = vmatprep.subr.mxu0 0.0
        %1333 = vmatpush1.msra.mxu0 0.0
        %1334 = vmatprep.subr.mxu0 0.0
        %1335 = vmatpush1.msra.mxu0 0.0
        %1336 = vmatprep.subr.mxu0 0.0
        %1337 = vmatpush1.msra.mxu0 0.0
        %1338 = vmatprep.subr.mxu0 0.0
        %1339 = vmatpush1.msra.mxu0 0.0
        %1340 = vmatprep.subr.mxu0 0.0
        %1341 = vmatpush1.msra.mxu0 0.0
        %1342 = vmatprep.subr.mxu0 0.0
        %1343 = vmatpush1.msra.mxu0 0.0
        %1344 = vmatprep.subr.mxu0 0.0
        %1345 = vmatpush1.msra.mxu0 0.0
        %1346 = vmatprep.subr.mxu0 0.0
        %1347 = vmatpush1.msra.mxu0 0.0
        %1348 = vmatprep.subr.mxu0 0.0
        %1349 = vmatpush1.msra.mxu0 0.0
        %1350 = vmatprep.subr.mxu0 0.0
        %1351 = vmatpush1.msra.mxu0 0.0
        %1352 = vmatprep.subr.mxu0 0.0
        %1353 = vmatpush1.msra.mxu0 0.0
        %1354 = vmatprep.subr.mxu0 0.0
        %1355 = vmatpush1.msra.mxu0 0.0
        %1356 = vmatprep.subr.mxu0 0.0
        %1357 = vmatpush1.msra.mxu0 0.0
        %1358 = vmatprep.subr.mxu0 0.0
        %1359 = vmatpush1.msra.mxu0 0.0
        %1360 = vmatprep.mubr.f32.mxu0 0.0
        %1361 = vmatmul.mubr.f32.gmra.mrb[0].mxu0 %v1294
        %v1362 = vpop.f32.mrb[0].mxu0
        %v1363 = vadd.f32 0.0, %v1362
        %v1364 = vpop.f32.mrb[0].mxu0
        %1365 = vdwg.mxu0
        %v1367 = vsel %vm1039, %v1363, 0
        %1369 = vmatprep.subr.mxu0 0.0
        %1370 = vmatpush1.msra.mxu0 %v1036
        %1371 = vmatprep.subr.mxu0 0.0
        %1372 = vmatpush1.msra.mxu0 0.0
        %1373 = vmatprep.subr.mxu0 0.0
        %1374 = vmatpush1.msra.mxu0 0.0
        %1375 = vmatprep.subr.mxu0 0.0
        %1376 = vmatpush1.msra.mxu0 0.0
        %1377 = vmatprep.subr.mxu0 0.0
        %1378 = vmatpush1.msra.mxu0 0.0
        %1379 = vmatprep.subr.mxu0 0.0
        %1380 = vmatpush1.msra.mxu0 0.0
        %1381 = vmatprep.subr.mxu0 0.0
        %1382 = vmatpush1.msra.mxu0 0.0
        %1383 = vmatprep.subr.mxu0 0.0
        %1384 = vmatpush1.msra.mxu0 0.0
        %1385 = vmatprep.subr.mxu0 0.0
        %1386 = vmatpush1.msra.mxu0 0.0
        %1387 = vmatprep.subr.mxu0 0.0
        %1388 = vmatpush1.msra.mxu0 0.0
        %1389 = vmatprep.subr.mxu0 0.0
        %1390 = vmatpush1.msra.mxu0 0.0
        %1391 = vmatprep.subr.mxu0 0.0
        %1392 = vmatpush1.msra.mxu0 0.0
        %1393 = vmatprep.subr.mxu0 0.0
        %1394 = vmatpush1.msra.mxu0 0.0
        %1395 = vmatprep.subr.mxu0 0.0
        %1396 = vmatpush1.msra.mxu0 0.0
        %1397 = vmatprep.subr.mxu0 0.0
        %1398 = vmatpush1.msra.mxu0 0.0
        %1399 = vmatprep.subr.mxu0 0.0
        %1400 = vmatpush1.msra.mxu0 0.0
        %1401 = vmatprep.subr.mxu0 0.0
        %1402 = vmatpush1.msra.mxu0 0.0
        %1403 = vmatprep.subr.mxu0 0.0
        %1404 = vmatpush1.msra.mxu0 0.0
        %1405 = vmatprep.subr.mxu0 0.0
        %1406 = vmatpush1.msra.mxu0 0.0
        %1407 = vmatprep.subr.mxu0 0.0
        %1408 = vmatpush1.msra.mxu0 0.0
        %1409 = vmatprep.subr.mxu0 0.0
        %1410 = vmatpush1.msra.mxu0 0.0
        %1411 = vmatprep.subr.mxu0 0.0
        %1412 = vmatpush1.msra.mxu0 0.0
        %1413 = vmatprep.subr.mxu0 0.0
        %1414 = vmatpush1.msra.mxu0 0.0
        %1415 = vmatprep.subr.mxu0 0.0
        %1416 = vmatpush1.msra.mxu0 0.0
        %1417 = vmatprep.subr.mxu0 0.0
        %1418 = vmatpush1.msra.mxu0 0.0
        %1419 = vmatprep.subr.mxu0 0.0
        %1420 = vmatpush1.msra.mxu0 0.0
        %1421 = vmatprep.subr.mxu0 0.0
        %1422 = vmatpush1.msra.mxu0 0.0
        %1423 = vmatprep.subr.mxu0 0.0
        %1424 = vmatpush1.msra.mxu0 0.0
        %1425 = vmatprep.subr.mxu0 0.0
        %1426 = vmatpush1.msra.mxu0 0.0
        %1427 = vmatprep.subr.mxu0 0.0
        %1428 = vmatpush1.msra.mxu0 0.0
        %1429 = vmatprep.subr.mxu0 0.0
        %1430 = vmatpush1.msra.mxu0 0.0
        %1431 = vmatprep.subr.mxu0 0.0
        %1432 = vmatpush1.msra.mxu0 0.0
        %1433 = vmatprep.mubr.f32.mxu0 0.0
        %1434 = vmatmul.mubr.f32.gmra.mrb[0].mxu0 %v1367
        %v1435 = vpop.f32.mrb[0].mxu0
        %v1436 = vadd.f32 0.0, %v1435
        %v1437 = vpop.f32.mrb[0].mxu0
        %1438 = vdwg.mxu0
        %v1440 = vsel %vm1039, %v1197, 0
        %1442 = vmatprep.subr.mxu0 0.0
        %1443 = vmatpush1.msra.mxu0 %v1035
        %1444 = vmatprep.subr.mxu0 0.0
        %1445 = vmatpush1.msra.mxu0 0.0
        %1446 = vmatprep.subr.mxu0 0.0
        %1447 = vmatpush1.msra.mxu0 0.0
        %1448 = vmatprep.subr.mxu0 0.0
        %1449 = vmatpush1.msra.mxu0 0.0
        %1450 = vmatprep.subr.mxu0 0.0
        %1451 = vmatpush1.msra.mxu0 0.0
        %1452 = vmatprep.subr.mxu0 0.0
        %1453 = vmatpush1.msra.mxu0 0.0
        %1454 = vmatprep.subr.mxu0 0.0
        %1455 = vmatpush1.msra.mxu0 0.0
        %1456 = vmatprep.subr.mxu0 0.0
        %1457 = vmatpush1.msra.mxu0 0.0
        %1458 = vmatprep.subr.mxu0 0.0
        %1459 = vmatpush1.msra.mxu0 0.0
        %1460 = vmatprep.subr.mxu0 0.0
        %1461 = vmatpush1.msra.mxu0 0.0
        %1462 = vmatprep.subr.mxu0 0.0
        %1463 = vmatpush1.msra.mxu0 0.0
        %1464 = vmatprep.subr.mxu0 0.0
        %1465 = vmatpush1.msra.mxu0 0.0
        %1466 = vmatprep.subr.mxu0 0.0
        %1467 = vmatpush1.msra.mxu0 0.0
        %1468 = vmatprep.subr.mxu0 0.0
        %1469 = vmatpush1.msra.mxu0 0.0
        %1470 = vmatprep.subr.mxu0 0.0
        %1471 = vmatpush1.msra.mxu0 0.0
        %1472 = vmatprep.subr.mxu0 0.0
        %1473 = vmatpush1.msra.mxu0 0.0
        %1474 = vmatprep.subr.mxu0 0.0
        %1475 = vmatpush1.msra.mxu0 0.0
        %1476 = vmatprep.subr.mxu0 0.0
        %1477 = vmatpush1.msra.mxu0 0.0
        %1478 = vmatprep.subr.mxu0 0.0
        %1479 = vmatpush1.msra.mxu0 0.0
        %1480 = vmatprep.subr.mxu0 0.0
        %1481 = vmatpush1.msra.mxu0 0.0
        %1482 = vmatprep.subr.mxu0 0.0
        %1483 = vmatpush1.msra.mxu0 0.0
        %1484 = vmatprep.subr.mxu0 0.0
        %1485 = vmatpush1.msra.mxu0 0.0
        %1486 = vmatprep.subr.mxu0 0.0
        %1487 = vmatpush1.msra.mxu0 0.0
        %1488 = vmatprep.subr.mxu0 0.0
        %1489 = vmatpush1.msra.mxu0 0.0
        %1490 = vmatprep.subr.mxu0 0.0
        %1491 = vmatpush1.msra.mxu0 0.0
        %1492 = vmatprep.subr.mxu0 0.0
        %1493 = vmatpush1.msra.mxu0 0.0
        %1494 = vmatprep.subr.mxu0 0.0
        %1495 = vmatpush1.msra.mxu0 0.0
        %1496 = vmatprep.subr.mxu0 0.0
        %1497 = vmatpush1.msra.mxu0 0.0
        %1498 = vmatprep.subr.mxu0 0.0
        %1499 = vmatpush1.msra.mxu0 0.0
        %1500 = vmatprep.subr.mxu0 0.0
        %1501 = vmatpush1.msra.mxu0 0.0
        %1502 = vmatprep.subr.mxu0 0.0
        %1503 = vmatpush1.msra.mxu0 0.0
        %1504 = vmatprep.subr.mxu0 0.0
        %1505 = vmatpush1.msra.mxu0 0.0
        %1506 = vmatprep.mubr.f32.mxu0 0.0
        %1507 = vmatmul.mubr.f32.gmra.mrb[0].mxu0 %v1440
        %v1508 = vpop.f32.mrb[0].mxu0
        %v1509 = vadd.f32 %v1436, %v1508
        %v1510 = vpop.f32.mrb[0].mxu0
        %1511 = vdwg.mxu0
        %1512 = vrot.lane.b32.xlu0 %v1011, 112
        %v1513 = vpop.permute.xlu0 %1512
        %1514 = vrot.lane.b32.xlu0 %v1034, 112
        %v1515 = vpop.permute.xlu0 %1514
        %v1516 = vsel %vm1039, %v1513, 0
        %v1518 = vsel %vm1039, %v1515, 0
        %1520 = vmatprep.subr.mxu0 0.0
        %1521 = vmatpush1.xpose.msra.mxu0 %v1518
        %1522 = vmatprep.subr.mxu0 0.0
        %1523 = vmatpush1.xpose.msra.mxu0 0.0
        %1524 = vmatprep.subr.mxu0 0.0
        %1525 = vmatpush1.xpose.msra.mxu0 0.0
        %1526 = vmatprep.subr.mxu0 0.0
        %1527 = vmatpush1.xpose.msra.mxu0 0.0
        %1528 = vmatprep.subr.mxu0 0.0
        %1529 = vmatpush1.xpose.msra.mxu0 0.0
        %1530 = vmatprep.subr.mxu0 0.0
        %1531 = vmatpush1.xpose.msra.mxu0 0.0
        %1532 = vmatprep.subr.mxu0 0.0
        %1533 = vmatpush1.xpose.msra.mxu0 0.0
        %1534 = vmatprep.subr.mxu0 0.0
        %1535 = vmatpush1.xpose.msra.mxu0 0.0
        %1536 = vmatprep.subr.mxu0 0.0
        %1537 = vmatpush1.xpose.msra.mxu0 0.0
        %1538 = vmatprep.subr.mxu0 0.0
        %1539 = vmatpush1.xpose.msra.mxu0 0.0
        %1540 = vmatprep.subr.mxu0 0.0
        %1541 = vmatpush1.xpose.msra.mxu0 0.0
        %1542 = vmatprep.subr.mxu0 0.0
        %1543 = vmatpush1.xpose.msra.mxu0 0.0
        %1544 = vmatprep.subr.mxu0 0.0
        %1545 = vmatpush1.xpose.msra.mxu0 0.0
        %1546 = vmatprep.subr.mxu0 0.0
        %1547 = vmatpush1.xpose.msra.mxu0 0.0
        %1548 = vmatprep.subr.mxu0 0.0
        %1549 = vmatpush1.xpose.msra.mxu0 0.0
        %1550 = vmatprep.subr.mxu0 0.0
        %1551 = vmatpush1.xpose.msra.mxu0 0.0
        %1552 = vmatprep.subr.mxu0 0.0
        %1553 = vmatpush1.xpose.msra.mxu0 0.0
        %1554 = vmatprep.subr.mxu0 0.0
        %1555 = vmatpush1.xpose.msra.mxu0 0.0
        %1556 = vmatprep.subr.mxu0 0.0
        %1557 = vmatpush1.xpose.msra.mxu0 0.0
        %1558 = vmatprep.subr.mxu0 0.0
        %1559 = vmatpush1.xpose.msra.mxu0 0.0
        %1560 = vmatprep.subr.mxu0 0.0
        %1561 = vmatpush1.xpose.msra.mxu0 0.0
        %1562 = vmatprep.subr.mxu0 0.0
        %1563 = vmatpush1.xpose.msra.mxu0 0.0
        %1564 = vmatprep.subr.mxu0 0.0
        %1565 = vmatpush1.xpose.msra.mxu0 0.0
        %1566 = vmatprep.subr.mxu0 0.0
        %1567 = vmatpush1.xpose.msra.mxu0 0.0
        %1568 = vmatprep.subr.mxu0 0.0
        %1569 = vmatpush1.xpose.msra.mxu0 0.0
        %1570 = vmatprep.subr.mxu0 0.0
        %1571 = vmatpush1.xpose.msra.mxu0 0.0
        %1572 = vmatprep.subr.mxu0 0.0
        %1573 = vmatpush1.xpose.msra.mxu0 0.0
        %1574 = vmatprep.subr.mxu0 0.0
        %1575 = vmatpush1.xpose.msra.mxu0 0.0
        %1576 = vmatprep.subr.mxu0 0.0
        %1577 = vmatpush1.xpose.msra.mxu0 0.0
        %1578 = vmatprep.subr.mxu0 0.0
        %1579 = vmatpush1.xpose.msra.mxu0 0.0
        %1580 = vmatprep.subr.mxu0 0.0
        %1581 = vmatpush1.xpose.msra.mxu0 0.0
        %1582 = vmatprep.subr.mxu0 0.0
        %1583 = vmatpush1.xpose.msra.mxu0 0.0
        %1584 = vmatprep.mubr.f32.mxu0 0.0
        %1585 = vmatmul.mubr.f32.gmra.mrb[0].mxu0 %v1516
        %v1586 = vpop.f32.mrb[0].mxu0
        %v1587 = vadd.f32 0.0, %v1586
        %v1588 = vpop.f32.mrb[0].mxu0
        %1589 = vdwg.mxu0
        %v1590 = vsel %vm1039, %v1587, -inf
        %1591 = vmax.xlane.f32.xlu0 %v1590
        %v1592 = vpop.xlane.xlu0 %1591
        %v1593 = vsub.f32 %v1587, %v1592
        %v1594 = vmul.f32 %v1593, 1.442695
        %v1595 = vpow.pop %v1594
        %v1596 = vsel %vm1039, %v1595, 0.0
        %1597 = vadd.xlane.f32.xlu0 %v1596
        %v1598 = vpop.xlane.xlu0 %1597
        %v1599 = vrcp.pop %v1598
        %v1600 = vmul.f32 %v1595, %v1599
        %1601 = vrot.lane.b32.xlu0 %v984, 112
        %v1602 = vpop.permute.xlu0 %1601
        %v1605 = vsel %vm1039, %v1600, 0
        %1607 = vmatprep.subr.mxu0 0.0
        %1608 = vmatpush1.msra.mxu0 %v1602
        %1609 = vmatprep.subr.mxu0 0.0
        %1610 = vmatpush1.msra.mxu0 0.0
        %1611 = vmatprep.subr.mxu0 0.0
        %1612 = vmatpush1.msra.mxu0 0.0
        %1613 = vmatprep.subr.mxu0 0.0
        %1614 = vmatpush1.msra.mxu0 0.0
        %1615 = vmatprep.subr.mxu0 0.0
        %1616 = vmatpush1.msra.mxu0 0.0
        %1617 = vmatprep.subr.mxu0 0.0
        %1618 = vmatpush1.msra.mxu0 0.0
        %1619 = vmatprep.subr.mxu0 0.0
        %1620 = vmatpush1.msra.mxu0 0.0
        %1621 = vmatprep.subr.mxu0 0.0
        %1622 = vmatpush1.msra.mxu0 0.0
        %1623 = vmatprep.subr.mxu0 0.0
        %1624 = vmatpush1.msra.mxu0 0.0
        %1625 = vmatprep.subr.mxu0 0.0
        %1626 = vmatpush1.msra.mxu0 0.0
        %1627 = vmatprep.subr.mxu0 0.0
        %1628 = vmatpush1.msra.mxu0 0.0
        %1629 = vmatprep.subr.mxu0 0.0
        %1630 = vmatpush1.msra.mxu0 0.0
        %1631 = vmatprep.subr.mxu0 0.0
        %1632 = vmatpush1.msra.mxu0 0.0
        %1633 = vmatprep.subr.mxu0 0.0
        %1634 = vmatpush1.msra.mxu0 0.0
        %1635 = vmatprep.subr.mxu0 0.0
        %1636 = vmatpush1.msra.mxu0 0.0
        %1637 = vmatprep.subr.mxu0 0.0
        %1638 = vmatpush1.msra.mxu0 0.0
        %1639 = vmatprep.subr.mxu0 0.0
        %1640 = vmatpush1.msra.mxu0 0.0
        %1641 = vmatprep.subr.mxu0 0.0
        %1642 = vmatpush1.msra.mxu0 0.0
        %1643 = vmatprep.subr.mxu0 0.0
        %1644 = vmatpush1.msra.mxu0 0.0
        %1645 = vmatprep.subr.mxu0 0.0
        %1646 = vmatpush1.msra.mxu0 0.0
        %1647 = vmatprep.subr.mxu0 0.0
        %1648 = vmatpush1.msra.mxu0 0.0
        %1649 = vmatprep.subr.mxu0 0.0
        %1650 = vmatpush1.msra.mxu0 0.0
        %1651 = vmatprep.subr.mxu0 0.0
        %1652 = vmatpush1.msra.mxu0 0.0
        %1653 = vmatprep.subr.mxu0 0.0
        %1654 = vmatpush1.msra.mxu0 0.0
        %1655 = vmatprep.subr.mxu0 0.0
        %1656 = vmatpush1.msra.mxu0 0.0
        %1657 = vmatprep.subr.mxu0 0.0
        %1658 = vmatpush1.msra.mxu0 0.0
        %1659 = vmatprep.subr.mxu0 0.0
        %1660 = vmatpush1.msra.mxu0 0.0
        %1661 = vmatprep.subr.mxu0 0.0
        %1662 = vmatpush1.msra.mxu0 0.0
        %1663 = vmatprep.subr.mxu0 0.0
        %1664 = vmatpush1.msra.mxu0 0.0
        %1665 = vmatprep.subr.mxu0 0.0
        %1666 = vmatpush1.msra.mxu0 0.0
        %1667 = vmatprep.subr.mxu0 0.0
        %1668 = vmatpush1.msra.mxu0 0.0
        %1669 = vmatprep.subr.mxu0 0.0
        %1670 = vmatpush1.msra.mxu0 0.0
        %1671 = vmatprep.mubr.f32.mxu0 0.0
        %1672 = vmatmul.mubr.f32.gmra.mrb[0].mxu0 %v1605
        %v1673 = vpop.f32.mrb[0].mxu0
        %v1674 = vadd.f32 0.0, %v1673
        %v1675 = vpop.f32.mrb[0].mxu0
        %1676 = vdwg.mxu0
        %v1678 = vsel %vm1039, %v1674, 0
        %1680 = vmatprep.subr.mxu0 0.0
        %1681 = vmatpush1.msra.mxu0 %v1037
        %1682 = vmatprep.subr.mxu0 0.0
        %1683 = vmatpush1.msra.mxu0 0.0
        %1684 = vmatprep.subr.mxu0 0.0
        %1685 = vmatpush1.msra.mxu0 0.0
        %1686 = vmatprep.subr.mxu0 0.0
        %1687 = vmatpush1.msra.mxu0 0.0
        %1688 = vmatprep.subr.mxu0 0.0
        %1689 = vmatpush1.msra.mxu0 0.0
        %1690 = vmatprep.subr.mxu0 0.0
        %1691 = vmatpush1.msra.mxu0 0.0
        %1692 = vmatprep.subr.mxu0 0.0
        %1693 = vmatpush1.msra.mxu0 0.0
        %1694 = vmatprep.subr.mxu0 0.0
        %1695 = vmatpush1.msra.mxu0 0.0
        %1696 = vmatprep.subr.mxu0 0.0
        %1697 = vmatpush1.msra.mxu0 0.0
        %1698 = vmatprep.subr.mxu0 0.0
        %1699 = vmatpush1.msra.mxu0 0.0
        %1700 = vmatprep.subr.mxu0 0.0
        %1701 = vmatpush1.msra.mxu0 0.0
        %1702 = vmatprep.subr.mxu0 0.0
        %1703 = vmatpush1.msra.mxu0 0.0
        %1704 = vmatprep.subr.mxu0 0.0
        %1705 = vmatpush1.msra.mxu0 0.0
        %1706 = vmatprep.subr.mxu0 0.0
        %1707 = vmatpush1.msra.mxu0 0.0
        %1708 = vmatprep.subr.mxu0 0.0
        %1709 = vmatpush1.msra.mxu0 0.0
        %1710 = vmatprep.subr.mxu0 0.0
        %1711 = vmatpush1.msra.mxu0 0.0
        %1712 = vmatprep.subr.mxu0 0.0
        %1713 = vmatpush1.msra.mxu0 0.0
        %1714 = vmatprep.subr.mxu0 0.0
        %1715 = vmatpush1.msra.mxu0 0.0
        %1716 = vmatprep.subr.mxu0 0.0
        %1717 = vmatpush1.msra.mxu0 0.0
        %1718 = vmatprep.subr.mxu0 0.0
        %1719 = vmatpush1.msra.mxu0 0.0
        %1720 = vmatprep.subr.mxu0 0.0
        %1721 = vmatpush1.msra.mxu0 0.0
        %1722 = vmatprep.subr.mxu0 0.0
        %1723 = vmatpush1.msra.mxu0 0.0
        %1724 = vmatprep.subr.mxu0 0.0
        %1725 = vmatpush1.msra.mxu0 0.0
        %1726 = vmatprep.subr.mxu0 0.0
        %1727 = vmatpush1.msra.mxu0 0.0
        %1728 = vmatprep.subr.mxu0 0.0
        %1729 = vmatpush1.msra.mxu0 0.0
        %1730 = vmatprep.subr.mxu0 0.0
        %1731 = vmatpush1.msra.mxu0 0.0
        %1732 = vmatprep.subr.mxu0 0.0
        %1733 = vmatpush1.msra.mxu0 0.0
        %1734 = vmatprep.subr.mxu0 0.0
        %1735 = vmatpush1.msra.mxu0 0.0
        %1736 = vmatprep.subr.mxu0 0.0
        %1737 = vmatpush1.msra.mxu0 0.0
        %1738 = vmatprep.subr.mxu0 0.0
        %1739 = vmatpush1.msra.mxu0 0.0
        %1740 = vmatprep.subr.mxu0 0.0
        %1741 = vmatpush1.msra.mxu0 0.0
        %1742 = vmatprep.subr.mxu0 0.0
        %1743 = vmatpush1.msra.mxu0 0.0
        %1744 = vmatprep.mubr.f32.mxu0 0.0
        %1745 = vmatmul.mubr.f32.gmra.mrb[0].mxu0 %v1678
        %v1746 = vpop.f32.mrb[0].mxu0
        %v1747 = vadd.f32 0.0, %v1746
        %v1748 = vpop.f32.mrb[0].mxu0
        %1749 = vdwg.mxu0
        %v1750 = vadd.f32 %v1509, %v1747
        %1751 = vrot.lane.b32.xlu0 %v1011, 104
        %v1752 = vpop.permute.xlu0 %1751
        %1753 = vrot.lane.b32.xlu0 %v1034, 104
        %v1754 = vpop.permute.xlu0 %1753
        %v1755 = vsel %vm1039, %v1752, 0
        %v1757 = vsel %vm1039, %v1754, 0
        %1759 = vmatprep.subr.mxu0 0.0
        %1760 = vmatpush1.xpose.msra.mxu0 %v1757
        %1761 = vmatprep.subr.mxu0 0.0
        %1762 = vmatpush1.xpose.msra.mxu0 0.0
        %1763 = vmatprep.subr.mxu0 0.0
        %1764 = vmatpush1.xpose.msra.mxu0 0.0
        %1765 = vmatprep.subr.mxu0 0.0
        %1766 = vmatpush1.xpose.msra.mxu0 0.0
        %1767 = vmatprep.subr.mxu0 0.0
        %1768 = vmatpush1.xpose.msra.mxu0 0.0
        %1769 = vmatprep.subr.mxu0 0.0
        %1770 = vmatpush1.xpose.msra.mxu0 0.0
        %1771 = vmatprep.subr.mxu0 0.0
        %1772 = vmatpush1.xpose.msra.mxu0 0.0
        %1773 = vmatprep.subr.mxu0 0.0
        %1774 = vmatpush1.xpose.msra.mxu0 0.0
        %1775 = vmatprep.subr.mxu0 0.0
        %1776 = vmatpush1.xpose.msra.mxu0 0.0
        %1777 = vmatprep.subr.mxu0 0.0
        %1778 = vmatpush1.xpose.msra.mxu0 0.0
        %1779 = vmatprep.subr.mxu0 0.0
        %1780 = vmatpush1.xpose.msra.mxu0 0.0
        %1781 = vmatprep.subr.mxu0 0.0
        %1782 = vmatpush1.xpose.msra.mxu0 0.0
        %1783 = vmatprep.subr.mxu0 0.0
        %1784 = vmatpush1.xpose.msra.mxu0 0.0
        %1785 = vmatprep.subr.mxu0 0.0
        %1786 = vmatpush1.xpose.msra.mxu0 0.0
        %1787 = vmatprep.subr.mxu0 0.0
        %1788 = vmatpush1.xpose.msra.mxu0 0.0
        %1789 = vmatprep.subr.mxu0 0.0
        %1790 = vmatpush1.xpose.msra.mxu0 0.0
        %1791 = vmatprep.subr.mxu0 0.0
        %1792 = vmatpush1.xpose.msra.mxu0 0.0
        %1793 = vmatprep.subr.mxu0 0.0
        %1794 = vmatpush1.xpose.msra.mxu0 0.0
        %1795 = vmatprep.subr.mxu0 0.0
        %1796 = vmatpush1.xpose.msra.mxu0 0.0
        %1797 = vmatprep.subr.mxu0 0.0
        %1798 = vmatpush1.xpose.msra.mxu0 0.0
        %1799 = vmatprep.subr.mxu0 0.0
        %1800 = vmatpush1.xpose.msra.mxu0 0.0
        %1801 = vmatprep.subr.mxu0 0.0
        %1802 = vmatpush1.xpose.msra.mxu0 0.0
        %1803 = vmatprep.subr.mxu0 0.0
        %1804 = vmatpush1.xpose.msra.mxu0 0.0
        %1805 = vmatprep.subr.mxu0 0.0
        %1806 = vmatpush1.xpose.msra.mxu0 0.0
        %1807 = vmatprep.subr.mxu0 0.0
        %1808 = vmatpush1.xpose.msra.mxu0 0.0
        %1809 = vmatprep.subr.mxu0 0.0
        %1810 = vmatpush1.xpose.msra.mxu0 0.0
        %1811 = vmatprep.subr.mxu0 0.0
        %1812 = vmatpush1.xpose.msra.mxu0 0.0
        %1813 = vmatprep.subr.mxu0 0.0
        %1814 = vmatpush1.xpose.msra.mxu0 0.0
        %1815 = vmatprep.subr.mxu0 0.0
        %1816 = vmatpush1.xpose.msra.mxu0 0.0
        %1817 = vmatprep.subr.mxu0 0.0
        %1818 = vmatpush1.xpose.msra.mxu0 0.0
        %1819 = vmatprep.subr.mxu0 0.0
        %1820 = vmatpush1.xpose.msra.mxu0 0.0
        %1821 = vmatprep.subr.mxu0 0.0
        %1822 = vmatpush1.xpose.msra.mxu0 0.0
        %1823 = vmatprep.mubr.f32.mxu0 0.0
        %1824 = vmatmul.mubr.f32.gmra.mrb[0].mxu0 %v1755
        %v1825 = vpop.f32.mrb[0].mxu0
        %v1826 = vadd.f32 0.0, %v1825
        %v1827 = vpop.f32.mrb[0].mxu0
        %1828 = vdwg.mxu0
        %v1829 = vsel %vm1039, %v1826, -inf
        %1830 = vmax.xlane.f32.xlu0 %v1829
        %v1831 = vpop.xlane.xlu0 %1830
        %v1832 = vsub.f32 %v1826, %v1831
        %v1833 = vmul.f32 %v1832, 1.442695
        %v1834 = vpow.pop %v1833
        %v1835 = vsel %vm1039, %v1834, 0.0
        %1836 = vadd.xlane.f32.xlu0 %v1835
        %v1837 = vpop.xlane.xlu0 %1836
        %v1838 = vrcp.pop %v1837
        %v1839 = vmul.f32 %v1834, %v1838
        %1840 = vrot.lane.b32.xlu0 %v984, 104
        %v1841 = vpop.permute.xlu0 %1840
        %v1844 = vsel %vm1039, %v1839, 0
        %1846 = vmatprep.subr.mxu0 0.0
        %1847 = vmatpush1.msra.mxu0 %v1841
        %1848 = vmatprep.subr.mxu0 0.0
        %1849 = vmatpush1.msra.mxu0 0.0
        %1850 = vmatprep.subr.mxu0 0.0
        %1851 = vmatpush1.msra.mxu0 0.0
        %1852 = vmatprep.subr.mxu0 0.0
        %1853 = vmatpush1.msra.mxu0 0.0
        %1854 = vmatprep.subr.mxu0 0.0
        %1855 = vmatpush1.msra.mxu0 0.0
        %1856 = vmatprep.subr.mxu0 0.0
        %1857 = vmatpush1.msra.mxu0 0.0
        %1858 = vmatprep.subr.mxu0 0.0
        %1859 = vmatpush1.msra.mxu0 0.0
        %1860 = vmatprep.subr.mxu0 0.0
        %1861 = vmatpush1.msra.mxu0 0.0
        %1862 = vmatprep.subr.mxu0 0.0
        %1863 = vmatpush1.msra.mxu0 0.0
        %1864 = vmatprep.subr.mxu0 0.0
        %1865 = vmatpush1.msra.mxu0 0.0
        %1866 = vmatprep.subr.mxu0 0.0
        %1867 = vmatpush1.msra.mxu0 0.0
        %1868 = vmatprep.subr.mxu0 0.0
        %1869 = vmatpush1.msra.mxu0 0.0
        %1870 = vmatprep.subr.mxu0 0.0
        %1871 = vmatpush1.msra.mxu0 0.0
        %1872 = vmatprep.subr.mxu0 0.0
        %1873 = vmatpush1.msra.mxu0 0.0
        %1874 = vmatprep.subr.mxu0 0.0
        %1875 = vmatpush1.msra.mxu0 0.0
        %1876 = vmatprep.subr.mxu0 0.0
        %1877 = vmatpush1.msra.mxu0 0.0
        %1878 = vmatprep.subr.mxu0 0.0
        %1879 = vmatpush1.msra.mxu0 0.0
        %1880 = vmatprep.subr.mxu0 0.0
        %1881 = vmatpush1.msra.mxu0 0.0
        %1882 = vmatprep.subr.mxu0 0.0
        %1883 = vmatpush1.msra.mxu0 0.0
        %1884 = vmatprep.subr.mxu0 0.0
        %1885 = vmatpush1.msra.mxu0 0.0
        %1886 = vmatprep.subr.mxu0 0.0
        %1887 = vmatpush1.msra.mxu0 0.0
        %1888 = vmatprep.subr.mxu0 0.0
        %1889 = vmatpush1.msra.mxu0 0.0
        %1890 = vmatprep.subr.mxu0 0.0
        %1891 = vmatpush1.msra.mxu0 0.0
        %1892 = vmatprep.subr.mxu0 0.0
        %1893 = vmatpush1.msra.mxu0 0.0
        %1894 = vmatprep.subr.mxu0 0.0
        %1895 = vmatpush1.msra.mxu0 0.0
        %1896 = vmatprep.subr.mxu0 0.0
        %1897 = vmatpush1.msra.mxu0 0.0
        %1898 = vmatprep.subr.mxu0 0.0
        %1899 = vmatpush1.msra.mxu0 0.0
        %1900 = vmatprep.subr.mxu0 0.0
        %1901 = vmatpush1.msra.mxu0 0.0
        %1902 = vmatprep.subr.mxu0 0.0
        %1903 = vmatpush1.msra.mxu0 0.0
        %1904 = vmatprep.subr.mxu0 0.0
        %1905 = vmatpush1.msra.mxu0 0.0
        %1906 = vmatprep.subr.mxu0 0.0
        %1907 = vmatpush1.msra.mxu0 0.0
        %1908 = vmatprep.subr.mxu0 0.0
        %1909 = vmatpush1.msra.mxu0 0.0
        %1910 = vmatprep.mubr.f32.mxu0 0.0
        %1911 = vmatmul.mubr.f32.gmra.mrb[0].mxu0 %v1844
        %v1912 = vpop.f32.mrb[0].mxu0
        %v1913 = vadd.f32 0.0, %v1912
        %v1914 = vpop.f32.mrb[0].mxu0
        %1915 = vdwg.mxu0
        %v1917 = vsel %vm1039, %v1913, 0
        %1919 = vmatprep.subr.mxu0 0.0
        %1920 = vmatpush1.msra.mxu0 %v1038
        %1921 = vmatprep.subr.mxu0 0.0
        %1922 = vmatpush1.msra.mxu0 0.0
        %1923 = vmatprep.subr.mxu0 0.0
        %1924 = vmatpush1.msra.mxu0 0.0
        %1925 = vmatprep.subr.mxu0 0.0
        %1926 = vmatpush1.msra.mxu0 0.0
        %1927 = vmatprep.subr.mxu0 0.0
        %1928 = vmatpush1.msra.mxu0 0.0
        %1929 = vmatprep.subr.mxu0 0.0
        %1930 = vmatpush1.msra.mxu0 0.0
        %1931 = vmatprep.subr.mxu0 0.0
        %1932 = vmatpush1.msra.mxu0 0.0
        %1933 = vmatprep.subr.mxu0 0.0
        %1934 = vmatpush1.msra.mxu0 0.0
        %1935 = vmatprep.subr.mxu0 0.0
        %1936 = vmatpush1.msra.mxu0 0.0
        %1937 = vmatprep.subr.mxu0 0.0
        %1938 = vmatpush1.msra.mxu0 0.0
        %1939 = vmatprep.subr.mxu0 0.0
        %1940 = vmatpush1.msra.mxu0 0.0
        %1941 = vmatprep.subr.mxu0 0.0
        %1942 = vmatpush1.msra.mxu0 0.0
        %1943 = vmatprep.subr.mxu0 0.0
        %1944 = vmatpush1.msra.mxu0 0.0
        %1945 = vmatprep.subr.mxu0 0.0
        %1946 = vmatpush1.msra.mxu0 0.0
        %1947 = vmatprep.subr.mxu0 0.0
        %1948 = vmatpush1.msra.mxu0 0.0
        %1949 = vmatprep.subr.mxu0 0.0
        %1950 = vmatpush1.msra.mxu0 0.0
        %1951 = vmatprep.subr.mxu0 0.0
        %1952 = vmatpush1.msra.mxu0 0.0
        %1953 = vmatprep.subr.mxu0 0.0
        %1954 = vmatpush1.msra.mxu0 0.0
        %1955 = vmatprep.subr.mxu0 0.0
        %1956 = vmatpush1.msra.mxu0 0.0
        %1957 = vmatprep.subr.mxu0 0.0
        %1958 = vmatpush1.msra.mxu0 0.0
        %1959 = vmatprep.subr.mxu0 0.0
        %1960 = vmatpush1.msra.mxu0 0.0
        %1961 = vmatprep.subr.mxu0 0.0
        %1962 = vmatpush1.msra.mxu0 0.0
        %1963 = vmatprep.subr.mxu0 0.0
        %1964 = vmatpush1.msra.mxu0 0.0
        %1965 = vmatprep.subr.mxu0 0.0
        %1966 = vmatpush1.msra.mxu0 0.0
        %1967 = vmatprep.subr.mxu0 0.0
        %1968 = vmatpush1.msra.mxu0 0.0
        %1969 = vmatprep.subr.mxu0 0.0
        %1970 = vmatpush1.msra.mxu0 0.0
        %1971 = vmatprep.subr.mxu0 0.0
        %1972 = vmatpush1.msra.mxu0 0.0
        %1973 = vmatprep.subr.mxu0 0.0
        %1974 = vmatpush1.msra.mxu0 0.0
        %1975 = vmatprep.subr.mxu0 0.0
        %1976 = vmatpush1.msra.mxu0 0.0
        %1977 = vmatprep.subr.mxu0 0.0
        %1978 = vmatpush1.msra.mxu0 0.0
        %1979 = vmatprep.subr.mxu0 0.0
        %1980 = vmatpush1.msra.mxu0 0.0
        %1981 = vmatprep.subr.mxu0 0.0
        %1982 = vmatpush1.msra.mxu0 0.0
        %1983 = vmatprep.mubr.f32.mxu0 0.0
        %1984 = vmatmul.mubr.f32.gmra.mrb[0].mxu0 %v1917
        %v1985 = vpop.f32.mrb[0].mxu0
        %v1986 = vadd.f32 0.0, %v1985
        %v1987 = vpop.f32.mrb[0].mxu0
        %1988 = vdwg.mxu0
        %v1989 = vadd.f32 %v1750, %v1986
        %v1990 = vld [vmem:[#allocation17] sm:$0x1]
        %v1992 = vlaneseq
        %v1993 = vshrl.u32 %v1992, 7
        %v1994 = vsub.s32 0, %v1993
        %v1995 = vrot.slane %v1990, %v1994
        %v1997 = vadd.f32 %v1989, %v1995
        %1998 = vst.msk [vmem:[%s730] sm:$0xff] %vm743, %v1997
        %s1999 = sand.u32 %s421, 1
        %s2000 = scalar_lea.sflag [#allocation4], %s1999
        %s2001 = sand.u32 %s421, 1
        %s2002 = smul.addr %s2001, 8
        %s2003 = scalar_lea.vmem [#allocation19], %s2002
        // Predicated region
        $region129: #{tpu_custom_call.1} parent=87 // pred_check
          %p2004 = pneg %p431
        $region130: #{tpu_custom_call.1} parent=87 // pred_check_branch
          %2006 = sbr.rel (%p2004) target = $region132
        $region131: #{tpu_custom_call.1} parent=87 // pred_region
          %s2008 = ssub.s32 128, 128
          %2009 = vsyncadd %s2000, %s2008
          %s2010 = smul.addr %s41, 128
          %s2011 = scalar_lea.hbm %s17, %s2010
          %s2013 = sshll.u32 %s2003, 4
          %s2014 = int_to_ptr.vmem [resolvable:$true] %s2013
          %2016 = dma.vmem_to_hbm [thread:$0]  %s2014, 128, %s2011, %s2000
        $region132: #{tpu_custom_call.1} parent=87 // pred_fallthru
          _
      $region88: #{tpu_custom_call.1} parent=5 // pred_fallthru
        _
      %p2017 = scmp.le.s32.totalorder 2, %s36
      // Predicated region
      $region133: #{tpu_custom_call.1} parent=5 // pred_check
        %p2018 = pneg %p2017
      $region134: #{tpu_custom_call.1} parent=5 // pred_check_branch
        %2020 = sbr.rel (%p2018) target = $region136
      $region135: #{tpu_custom_call.1} parent=5 // pred_region
        %s2021 = ssub.s32 %s36, 2
        // Predicated region
        $region137: #{tpu_custom_call.1} parent=135 // pred_check
          %p2022 = pneg %p437
        $region138: #{tpu_custom_call.1} parent=135 // pred_check_branch
          %2024 = sbr.rel (%p2022) target = $region140
        $region139: #{tpu_custom_call.1} parent=135 // pred_region
          %s2025 = sand.u32 %s422, 1
          %s2026 = scalar_lea.sflag [#allocation4], %s2025
          %s2027 = sand.u32 %s422, 1
          %s2028 = smul.addr %s2027, 8
          %s2029 = scalar_lea.vmem [#allocation19], %s2028
          %2030 = dma.done %s2026, 128
        $region140: #{tpu_custom_call.1} parent=135 // pred_fallthru
          _
      $region136: #{tpu_custom_call.1} parent=5 // pred_fallthru
        _
    $region6: #{tpu_custom_call.1} parent=1 // loop_footer
      %s40 = sadd.s32 1, %s36
    $region7: #{tpu_custom_call.1} parent=1 // loop_footer_branch
      %35 = sbr.rel target = $region3
    $region8: #{tpu_custom_call.1} parent=1 // loop_exit
      _
    %2031 = vsyncpa [#allocation3], 1
    %s2032 = scalar_lea.sflag [#allocation3], 1
    %2033 = vsyncpa %s2032, 1
    %2034 = vsyncpa [#allocation6], 1
    %s2035 = scalar_lea.sflag [#allocation6], 1
    %2036 = vsyncpa %s2035, 1
    %2037 = vsyncpa [#allocation9], 1
    %2038 = vsyncpa [#allocation12], 1
    %2039 = vsyncpa [#allocation15], 1
    %2040 = vsyncpa [#allocation18], 1
    %2041 = vsyncpa [#allocation4], 1
    %s2042 = scalar_lea.sflag [#allocation4], 1
    %2043 = vsyncpa %s2042, 1

</llo_original>
